<compile_context>
chip_gen: v5e
topology: v5e:2x2
jax: 0.10.0
libtpu: 0.0.40
codegen_flags: <defaults>
</compile_context>

<pallas_src>
import jax
import jax.numpy as jnp
from jax.experimental import pallas as pl
from jax.experimental.pallas import tpu as pltpu

LANE = 128

# Offsets into the flattened (81,) parameter vector (row-major packing, (in,out) layout).
W1_OFF = 0          # (4, 8)
B1_OFF = 32         # (8,)
W2_OFF = 40         # (8, 4)
B2_OFF = 72         # (4,)
W3_OFF = 76         # (4, 1)
B3_OFF = 80         # (1,)
N_PARAMS = 81


def make_critic_kernel(strip_rows, compute_dtype):
    """Build the kernel for a given strip size (rows) and compute dtype (f32/bf16)."""
    cdt = compute_dtype

    def critic_kernel(p_ref, x_ref, o_ref):
        # p_ref: (81,) f32 SMEM.  x_ref: (4, tr, 128) VMEM (cdt).  o_ref: (tr, 128) f32 VMEM.
        # Read all 81 scalars once per grid step (SMEM loads + casts, hoisted out of the loop).
        w1 = [[p_ref[W1_OFF + k * 8 + j].astype(cdt) for j in range(8)] for k in range(4)]
        b1 = [p_ref[B1_OFF + j].astype(cdt) for j in range(8)]
        w2 = [[p_ref[W2_OFF + k * 4 + j].astype(cdt) for j in range(4)] for k in range(8)]
        b2 = [p_ref[B2_OFF + j].astype(cdt) for j in range(4)]
        w3 = [p_ref[W3_OFF + k].astype(cdt) for k in range(4)]
        b3 = p_ref[B3_OFF].astype(cdt)

        n_strips = o_ref.shape[0] // strip_rows

        # Strip-mine the block: each strip's temporaries stay in vregs (no VMEM spills).
        @pl.loop(0, n_strips)
        def _(s):
            r0 = pl.multiple_of(s * strip_rows, strip_rows)
            rows = pl.ds(r0, strip_rows)
            xs = [x_ref[k, rows, :] for k in range(4)]            # 4 x (strip, 128), cdt

            # Layer-2 accumulators start at their bias; each layer-1 output is consumed
            # immediately (fused), so at most ~10 strip-sized slabs are live at once.
            h2 = [jnp.broadcast_to(b2[j], (strip_rows, LANE)) for j in range(4)]
            for k in range(8):                                    # layer-1 hidden unit k
                a = xs[0] * w1[0][k]
                for i in range(1, 4):
                    a = a + xs[i] * w1[i][k]
                a = jnp.maximum(a + b1[k], 0.0)                   # ReLU
                for j in range(4):
                    h2[j] = h2[j] + a * w2[k][j]

            # Layer-2 ReLU + layer 3 (classifier_v).
            v = jnp.broadcast_to(b3, (strip_rows, LANE))
            for j in range(4):
                v = v + jnp.maximum(h2[j], 0.0) * w3[j]
            o_ref[rows, :] = v.astype(o_ref.dtype)

    return critic_kernel


def _round_up(a, b):
    return -(-a // b) * b


def _cdiv(a, b):
    return -(-a // b)


def _auto_bf16():
    """bf16 VPU path only on v6e / v7x (v5e has no bf16 VALU)."""
    try:
        dk = jax.devices()[0].device_kind.lower()
    except Exception:
        return False
    return ("v6" in dk or "v7" in dk) and "v5" not in dk


def nn_critic_forward(x, params, tile_rows=2048, use_bf16=None):
    """x: (B, 4) float32 -> (B, 1) float32.  params: dict with weights stored (in, out)."""
    if use_bf16 is None:
        use_bf16 = _auto_bf16()
    B = x.shape[0]
    x_dt = jnp.bfloat16 if use_bf16 else jnp.float32
    xbytes = 2 if use_bf16 else 4
    strip = 32 if use_bf16 else 16   # rows per in-kernel strip (~20 live vregs either way)

    # ---- choose the grid-step tile size: tr rows of 128 batch elements each ----
    R_needed = _round_up(B, strip * LANE) // LANE               # multiple of `strip`
    tr_max = max(strip, (int(tile_rows) // strip) * strip)
    n_steps = _cdiv(R_needed, tr_max)                           # respect the tile-size cap
    if R_needed >= 2 * strip:
        n_steps = max(n_steps, 2)                               # >=2 steps -> both v7x TCs busy
    if R_needed >= 2 * 64:
        n_steps = min(n_steps, R_needed // 64)                  # floor ~64 rows/step (overhead)
    n_steps = max(1, min(n_steps, R_needed // strip))
    tr = _round_up(_cdiv(R_needed, n_steps), strip)
    R = n_steps * tr
    B_pad = R * LANE

    # ---- layout plumbing (cheap XLA ops) ----
    # NOTE: the feature-major transpose of the skinny (B,4) input is one extra HBM
    # round-trip; in a real pipeline the producer should emit x feature-major so it
    # fuses away.  It is done in the compute dtype so bf16 halves its traffic.
    x_c = x.astype(x_dt)
    x_pad = x_c if B_pad == B else jnp.pad(x_c, ((0, B_pad - B), (0, 0)))
    x_fm = x_pad.T.reshape(4, R, LANE)                          # (4, R, 128), feature-major

    p_flat = jnp.concatenate([
        params["w1"].reshape(-1), params["b1"].reshape(-1),
        params["w2"].reshape(-1), params["b2"].reshape(-1),
        params["w3"].reshape(-1), params["b3"].reshape(-1),
    ]).astype(jnp.float32)                                      # (81,)

    # Double-buffered input + output tiles, plus slack for compiler-internal scratch.
    vmem_limit = 2 * (4 * tr * LANE * xbytes) + 2 * (tr * LANE * 4) + (4 << 20)
    cost = pl.CostEstimate(
        flops=150 * B_pad,                                      # ~136 MAC-flops + ReLUs / element
        transcendentals=0,
        bytes_accessed=B_pad * 4 * xbytes + B_pad * 4 + N_PARAMS * 4,
    )

    out = pl.pallas_call(
        make_critic_kernel(strip, x_dt),
        out_shape=jax.ShapeDtypeStruct((R, LANE), jnp.float32),
        grid=(n_steps,),
        in_specs=[
            # All 81 weight/bias scalars stay resident in SMEM across grid steps.
            pl.BlockSpec(memory_space=pltpu.MemorySpace.SMEM),
            # Batch-tiled, feature-major activations (auto double-buffered).
            pl.BlockSpec((4, tr, LANE), lambda i: (0, i, 0)),
        ],
        # Lane-dense (tr, 128) output block -> unmasked full-width vector stores.
        out_specs=pl.BlockSpec((tr, LANE), lambda i: (i, 0)),
        compiler_params=pltpu.CompilerParams(
            dimension_semantics=("parallel",),                  # shard batch grid across TCs
            vmem_limit_bytes=int(vmem_limit),
        ),
        cost_estimate=cost,
    )(p_flat, x_fm)

    return out.reshape(B_pad)[:B].reshape(B, 1)


def init_params(key):
    """Matches NNCritic.__init__ shapes; PyTorch Linear weight (out, in) stored transposed."""
    k1, k2, k3, k4, k5, k6 = jax.random.split(key, 6)

    def u(k, shape, fan_in):
        bound = 1.0 / jnp.sqrt(fan_in)
        return jax.random.uniform(k, shape, jnp.float32, -bound, bound)

    return {
        "w1": u(k1, (4, 8), 4.0),   # Linear(4, 8)
        "b1": u(k2, (1, 8), 4.0),
        "w2": u(k3, (8, 4), 8.0),   # Linear(8, 4)
        "b2": u(k4, (1, 4), 8.0),
        "w3": u(k5, (4, 1), 4.0),   # Linear(4, 1)  (classifier_v)
        "b3": u(k6, (1, 1), 4.0),
    }


def reference_forward(x, p):
    h1 = jnp.maximum(x @ p["w1"] + p["b1"], 0.0)
    h2 = jnp.maximum(h1 @ p["w2"] + p["b2"], 0.0)
    return h2 @ p["w3"] + p["b3"]


if __name__ == "__main__":
    key = jax.random.PRNGKey(0)
    pkey, xkey1, xkey2, xkey3 = jax.random.split(key, 4)
    params = init_params(pkey)

    use_bf16 = _auto_bf16()

    def make_fwd(bf16):
        return jax.jit(lambda s: nn_critic_forward(s, params, use_bf16=bf16))

    fwd = make_fwd(use_bf16)

    # Small shape consistent with the module: state s is (batch, 4).
    x_small = jax.random.normal(xkey1, (8, 4), jnp.float32)
    try:
        out_small = jax.block_until_ready(fwd(x_small))
    except Exception:
        # bf16 path not supported on this chip -> fall back to the f32 path.
        use_bf16 = False
        fwd = make_fwd(False)
        out_small = jax.block_until_ready(fwd(x_small))

    atol = rtol = 6e-2 if use_bf16 else 1e-5

    ref_small = reference_forward(x_small, params)
    assert out_small.shape == (8, 1), out_small.shape
    assert jnp.allclose(out_small, ref_small, atol=atol, rtol=rtol), "small-batch mismatch"

    # A batch that is not a tile multiple and runs over >=2 grid steps.
    x_mid = jax.random.normal(xkey2, (3000, 4), jnp.float32)
    out_mid = jax.block_until_ready(fwd(x_mid))
    ref_mid = reference_forward(x_mid, params)
    assert out_mid.shape == (3000, 1), out_mid.shape
    assert jnp.allclose(out_mid, ref_mid, atol=atol, rtol=rtol), "multi-tile mismatch"

    # Larger batch: exercises the >=64-rows/step floor and the >=2-step split.
    x_big = jax.random.normal(xkey3, (20000, 4), jnp.float32)
    out_big = jax.block_until_ready(fwd(x_big))
    ref_big = reference_forward(x_big, params)
    assert out_big.shape == (20000, 1), out_big.shape
    assert jnp.allclose(out_big, ref_big, atol=atol, rtol=rtol), "large-batch mismatch"

    print("KERNEL_OK")
</pallas_src>

<mosaic_0001>
module attributes {stable_mosaic.version = 11 : i64} {
  func.func @critic_kernel(%arg0: i32, %arg1: memref<81xf32, #tpu.memory_space<smem>>, %arg2: memref<4x16x128xf32, #tpu.memory_space<vmem>>, %arg3: memref<16x128xf32, #tpu.memory_space<vmem>>) attributes {dimension_semantics = [#tpu.dimension_semantics<parallel>], iteration_bounds = array<i64: 1>, scalar_prefetch = 0 : i64, scratch_operands = 0 : i64, tpu.core_type = #tpu.core_type<tc>, window_params = [{transform_indices = @transform_0, window_bounds = array<i64: 81>}, {transform_indices = @transform_1, window_bounds = array<i64: 4, 16, 128>}, {transform_indices = @transform_2, window_bounds = array<i64: 16, 128>}]} {
    %c0 = arith.constant 0 : index
    %0 = memref.load %arg1[%c0] : memref<81xf32, #tpu.memory_space<smem>>
    %c1 = arith.constant 1 : index
    %1 = memref.load %arg1[%c1] : memref<81xf32, #tpu.memory_space<smem>>
    %c2 = arith.constant 2 : index
    %2 = memref.load %arg1[%c2] : memref<81xf32, #tpu.memory_space<smem>>
    %c3 = arith.constant 3 : index
    %3 = memref.load %arg1[%c3] : memref<81xf32, #tpu.memory_space<smem>>
    %c4 = arith.constant 4 : index
    %4 = memref.load %arg1[%c4] : memref<81xf32, #tpu.memory_space<smem>>
    %c5 = arith.constant 5 : index
    %5 = memref.load %arg1[%c5] : memref<81xf32, #tpu.memory_space<smem>>
    %c6 = arith.constant 6 : index
    %6 = memref.load %arg1[%c6] : memref<81xf32, #tpu.memory_space<smem>>
    %c7 = arith.constant 7 : index
    %7 = memref.load %arg1[%c7] : memref<81xf32, #tpu.memory_space<smem>>
    %c8 = arith.constant 8 : index
    %8 = memref.load %arg1[%c8] : memref<81xf32, #tpu.memory_space<smem>>
    %c9 = arith.constant 9 : index
    %9 = memref.load %arg1[%c9] : memref<81xf32, #tpu.memory_space<smem>>
    %c10 = arith.constant 10 : index
    %10 = memref.load %arg1[%c10] : memref<81xf32, #tpu.memory_space<smem>>
    %c11 = arith.constant 11 : index
    %11 = memref.load %arg1[%c11] : memref<81xf32, #tpu.memory_space<smem>>
    %c12 = arith.constant 12 : index
    %12 = memref.load %arg1[%c12] : memref<81xf32, #tpu.memory_space<smem>>
    %c13 = arith.constant 13 : index
    %13 = memref.load %arg1[%c13] : memref<81xf32, #tpu.memory_space<smem>>
    %c14 = arith.constant 14 : index
    %14 = memref.load %arg1[%c14] : memref<81xf32, #tpu.memory_space<smem>>
    %c15 = arith.constant 15 : index
    %15 = memref.load %arg1[%c15] : memref<81xf32, #tpu.memory_space<smem>>
    %c16 = arith.constant 16 : index
    %16 = memref.load %arg1[%c16] : memref<81xf32, #tpu.memory_space<smem>>
    %c17 = arith.constant 17 : index
    %17 = memref.load %arg1[%c17] : memref<81xf32, #tpu.memory_space<smem>>
    %c18 = arith.constant 18 : index
    %18 = memref.load %arg1[%c18] : memref<81xf32, #tpu.memory_space<smem>>
    %c19 = arith.constant 19 : index
    %19 = memref.load %arg1[%c19] : memref<81xf32, #tpu.memory_space<smem>>
    %c20 = arith.constant 20 : index
    %20 = memref.load %arg1[%c20] : memref<81xf32, #tpu.memory_space<smem>>
    %c21 = arith.constant 21 : index
    %21 = memref.load %arg1[%c21] : memref<81xf32, #tpu.memory_space<smem>>
    %c22 = arith.constant 22 : index
    %22 = memref.load %arg1[%c22] : memref<81xf32, #tpu.memory_space<smem>>
    %c23 = arith.constant 23 : index
    %23 = memref.load %arg1[%c23] : memref<81xf32, #tpu.memory_space<smem>>
    %c24 = arith.constant 24 : index
    %24 = memref.load %arg1[%c24] : memref<81xf32, #tpu.memory_space<smem>>
    %c25 = arith.constant 25 : index
    %25 = memref.load %arg1[%c25] : memref<81xf32, #tpu.memory_space<smem>>
    %c26 = arith.constant 26 : index
    %26 = memref.load %arg1[%c26] : memref<81xf32, #tpu.memory_space<smem>>
    %c27 = arith.constant 27 : index
    %27 = memref.load %arg1[%c27] : memref<81xf32, #tpu.memory_space<smem>>
    %c28 = arith.constant 28 : index
    %28 = memref.load %arg1[%c28] : memref<81xf32, #tpu.memory_space<smem>>
    %c29 = arith.constant 29 : index
    %29 = memref.load %arg1[%c29] : memref<81xf32, #tpu.memory_space<smem>>
    %c30 = arith.constant 30 : index
    %30 = memref.load %arg1[%c30] : memref<81xf32, #tpu.memory_space<smem>>
    %c31 = arith.constant 31 : index
    %31 = memref.load %arg1[%c31] : memref<81xf32, #tpu.memory_space<smem>>
    %c32 = arith.constant 32 : index
    %32 = memref.load %arg1[%c32] : memref<81xf32, #tpu.memory_space<smem>>
    %c33 = arith.constant 33 : index
    %33 = memref.load %arg1[%c33] : memref<81xf32, #tpu.memory_space<smem>>
    %c34 = arith.constant 34 : index
    %34 = memref.load %arg1[%c34] : memref<81xf32, #tpu.memory_space<smem>>
    %c35 = arith.constant 35 : index
    %35 = memref.load %arg1[%c35] : memref<81xf32, #tpu.memory_space<smem>>
    %c36 = arith.constant 36 : index
    %36 = memref.load %arg1[%c36] : memref<81xf32, #tpu.memory_space<smem>>
    %c37 = arith.constant 37 : index
    %37 = memref.load %arg1[%c37] : memref<81xf32, #tpu.memory_space<smem>>
    %c38 = arith.constant 38 : index
    %38 = memref.load %arg1[%c38] : memref<81xf32, #tpu.memory_space<smem>>
    %c39 = arith.constant 39 : index
    %39 = memref.load %arg1[%c39] : memref<81xf32, #tpu.memory_space<smem>>
    %c40 = arith.constant 40 : index
    %40 = memref.load %arg1[%c40] : memref<81xf32, #tpu.memory_space<smem>>
    %c41 = arith.constant 41 : index
    %41 = memref.load %arg1[%c41] : memref<81xf32, #tpu.memory_space<smem>>
    %c42 = arith.constant 42 : index
    %42 = memref.load %arg1[%c42] : memref<81xf32, #tpu.memory_space<smem>>
    %c43 = arith.constant 43 : index
    %43 = memref.load %arg1[%c43] : memref<81xf32, #tpu.memory_space<smem>>
    %c44 = arith.constant 44 : index
    %44 = memref.load %arg1[%c44] : memref<81xf32, #tpu.memory_space<smem>>
    %c45 = arith.constant 45 : index
    %45 = memref.load %arg1[%c45] : memref<81xf32, #tpu.memory_space<smem>>
    %c46 = arith.constant 46 : index
    %46 = memref.load %arg1[%c46] : memref<81xf32, #tpu.memory_space<smem>>
    %c47 = arith.constant 47 : index
    %47 = memref.load %arg1[%c47] : memref<81xf32, #tpu.memory_space<smem>>
    %c48 = arith.constant 48 : index
    %48 = memref.load %arg1[%c48] : memref<81xf32, #tpu.memory_space<smem>>
    %c49 = arith.constant 49 : index
    %49 = memref.load %arg1[%c49] : memref<81xf32, #tpu.memory_space<smem>>
    %c50 = arith.constant 50 : index
    %50 = memref.load %arg1[%c50] : memref<81xf32, #tpu.memory_space<smem>>
    %c51 = arith.constant 51 : index
    %51 = memref.load %arg1[%c51] : memref<81xf32, #tpu.memory_space<smem>>
    %c52 = arith.constant 52 : index
    %52 = memref.load %arg1[%c52] : memref<81xf32, #tpu.memory_space<smem>>
    %c53 = arith.constant 53 : index
    %53 = memref.load %arg1[%c53] : memref<81xf32, #tpu.memory_space<smem>>
    %c54 = arith.constant 54 : index
    %54 = memref.load %arg1[%c54] : memref<81xf32, #tpu.memory_space<smem>>
    %c55 = arith.constant 55 : index
    %55 = memref.load %arg1[%c55] : memref<81xf32, #tpu.memory_space<smem>>
    %c56 = arith.constant 56 : index
    %56 = memref.load %arg1[%c56] : memref<81xf32, #tpu.memory_space<smem>>
    %c57 = arith.constant 57 : index
    %57 = memref.load %arg1[%c57] : memref<81xf32, #tpu.memory_space<smem>>
    %c58 = arith.constant 58 : index
    %58 = memref.load %arg1[%c58] : memref<81xf32, #tpu.memory_space<smem>>
    %c59 = arith.constant 59 : index
    %59 = memref.load %arg1[%c59] : memref<81xf32, #tpu.memory_space<smem>>
    %c60 = arith.constant 60 : index
    %60 = memref.load %arg1[%c60] : memref<81xf32, #tpu.memory_space<smem>>
    %c61 = arith.constant 61 : index
    %61 = memref.load %arg1[%c61] : memref<81xf32, #tpu.memory_space<smem>>
    %c62 = arith.constant 62 : index
    %62 = memref.load %arg1[%c62] : memref<81xf32, #tpu.memory_space<smem>>
    %c63 = arith.constant 63 : index
    %63 = memref.load %arg1[%c63] : memref<81xf32, #tpu.memory_space<smem>>
    %c64 = arith.constant 64 : index
    %64 = memref.load %arg1[%c64] : memref<81xf32, #tpu.memory_space<smem>>
    %c65 = arith.constant 65 : index
    %65 = memref.load %arg1[%c65] : memref<81xf32, #tpu.memory_space<smem>>
    %c66 = arith.constant 66 : index
    %66 = memref.load %arg1[%c66] : memref<81xf32, #tpu.memory_space<smem>>
    %c67 = arith.constant 67 : index
    %67 = memref.load %arg1[%c67] : memref<81xf32, #tpu.memory_space<smem>>
    %c68 = arith.constant 68 : index
    %68 = memref.load %arg1[%c68] : memref<81xf32, #tpu.memory_space<smem>>
    %c69 = arith.constant 69 : index
    %69 = memref.load %arg1[%c69] : memref<81xf32, #tpu.memory_space<smem>>
    %c70 = arith.constant 70 : index
    %70 = memref.load %arg1[%c70] : memref<81xf32, #tpu.memory_space<smem>>
    %c71 = arith.constant 71 : index
    %71 = memref.load %arg1[%c71] : memref<81xf32, #tpu.memory_space<smem>>
    %c72 = arith.constant 72 : index
    %72 = memref.load %arg1[%c72] : memref<81xf32, #tpu.memory_space<smem>>
    %c73 = arith.constant 73 : index
    %73 = memref.load %arg1[%c73] : memref<81xf32, #tpu.memory_space<smem>>
    %c74 = arith.constant 74 : index
    %74 = memref.load %arg1[%c74] : memref<81xf32, #tpu.memory_space<smem>>
    %c75 = arith.constant 75 : index
    %75 = memref.load %arg1[%c75] : memref<81xf32, #tpu.memory_space<smem>>
    %c76 = arith.constant 76 : index
    %76 = memref.load %arg1[%c76] : memref<81xf32, #tpu.memory_space<smem>>
    %c77 = arith.constant 77 : index
    %77 = memref.load %arg1[%c77] : memref<81xf32, #tpu.memory_space<smem>>
    %c78 = arith.constant 78 : index
    %78 = memref.load %arg1[%c78] : memref<81xf32, #tpu.memory_space<smem>>
    %c79 = arith.constant 79 : index
    %79 = memref.load %arg1[%c79] : memref<81xf32, #tpu.memory_space<smem>>
    %c80 = arith.constant 80 : index
    %80 = memref.load %arg1[%c80] : memref<81xf32, #tpu.memory_space<smem>>
    %c0_i32 = arith.constant 0 : i32
    %c1_i32 = arith.constant 1 : i32
    %81 = arith.muli %c0_i32, %c1_i32 : i32
    %c0_i32_0 = arith.constant 0 : i32
    %82 = arith.addi %c0_i32_0, %81 : i32
    %c16_i32 = arith.constant 16 : i32
    %83 = arith.muli %82, %c16_i32 : i32
    %84 = tpu.assume_multiple %83, 16 : i32
    %c0_1 = arith.constant 0 : index
    %85 = arith.index_cast %84 : i32 to index
    %c0_2 = arith.constant 0 : index
    %86 = vector.load %arg2[%c0_1, %85, %c0_2] : memref<4x16x128xf32, #tpu.memory_space<vmem>>, vector<1x16x128xf32>
    %87 = vector.shape_cast %86 : vector<1x16x128xf32> to vector<16x128xf32>
    %c1_3 = arith.constant 1 : index
    %88 = arith.index_cast %84 : i32 to index
    %c0_4 = arith.constant 0 : index
    %89 = vector.load %arg2[%c1_3, %88, %c0_4] : memref<4x16x128xf32, #tpu.memory_space<vmem>>, vector<1x16x128xf32>
    %90 = vector.shape_cast %89 : vector<1x16x128xf32> to vector<16x128xf32>
    %c2_5 = arith.constant 2 : index
    %91 = arith.index_cast %84 : i32 to index
    %c0_6 = arith.constant 0 : index
    %92 = vector.load %arg2[%c2_5, %91, %c0_6] : memref<4x16x128xf32, #tpu.memory_space<vmem>>, vector<1x16x128xf32>
    %93 = vector.shape_cast %92 : vector<1x16x128xf32> to vector<16x128xf32>
    %c3_7 = arith.constant 3 : index
    %94 = arith.index_cast %84 : i32 to index
    %c0_8 = arith.constant 0 : index
    %95 = vector.load %arg2[%c3_7, %94, %c0_8] : memref<4x16x128xf32, #tpu.memory_space<vmem>>, vector<1x16x128xf32>
    %96 = vector.shape_cast %95 : vector<1x16x128xf32> to vector<16x128xf32>
    %97 = vector.broadcast %72 : f32 to vector<16x128xf32>
    %98 = vector.broadcast %73 : f32 to vector<16x128xf32>
    %99 = vector.broadcast %74 : f32 to vector<16x128xf32>
    %100 = vector.broadcast %75 : f32 to vector<16x128xf32>
    %101 = vector.broadcast %0 : f32 to vector<16x128xf32>
    %102 = arith.mulf %87, %101 : vector<16x128xf32>
    %103 = vector.broadcast %8 : f32 to vector<16x128xf32>
    %104 = arith.mulf %90, %103 : vector<16x128xf32>
    %105 = arith.addf %102, %104 : vector<16x128xf32>
    %106 = vector.broadcast %16 : f32 to vector<16x128xf32>
    %107 = arith.mulf %93, %106 : vector<16x128xf32>
    %108 = arith.addf %105, %107 : vector<16x128xf32>
    %109 = vector.broadcast %24 : f32 to vector<16x128xf32>
    %110 = arith.mulf %96, %109 : vector<16x128xf32>
    %111 = arith.addf %108, %110 : vector<16x128xf32>
    %112 = vector.broadcast %32 : f32 to vector<16x128xf32>
    %113 = arith.addf %111, %112 : vector<16x128xf32>
    %cst = arith.constant 0.000000e+00 : f32
    %114 = vector.broadcast %cst : f32 to vector<16x128xf32>
    %115 = arith.maximumf %113, %114 : vector<16x128xf32>
    %116 = vector.broadcast %40 : f32 to vector<16x128xf32>
    %117 = arith.mulf %115, %116 : vector<16x128xf32>
    %118 = arith.addf %97, %117 : vector<16x128xf32>
    %119 = vector.broadcast %41 : f32 to vector<16x128xf32>
    %120 = arith.mulf %115, %119 : vector<16x128xf32>
    %121 = arith.addf %98, %120 : vector<16x128xf32>
    %122 = vector.broadcast %42 : f32 to vector<16x128xf32>
    %123 = arith.mulf %115, %122 : vector<16x128xf32>
    %124 = arith.addf %99, %123 : vector<16x128xf32>
    %125 = vector.broadcast %43 : f32 to vector<16x128xf32>
    %126 = arith.mulf %115, %125 : vector<16x128xf32>
    %127 = arith.addf %100, %126 : vector<16x128xf32>
    %128 = vector.broadcast %1 : f32 to vector<16x128xf32>
    %129 = arith.mulf %87, %128 : vector<16x128xf32>
    %130 = vector.broadcast %9 : f32 to vector<16x128xf32>
    %131 = arith.mulf %90, %130 : vector<16x128xf32>
    %132 = arith.addf %129, %131 : vector<16x128xf32>
    %133 = vector.broadcast %17 : f32 to vector<16x128xf32>
    %134 = arith.mulf %93, %133 : vector<16x128xf32>
    %135 = arith.addf %132, %134 : vector<16x128xf32>
    %136 = vector.broadcast %25 : f32 to vector<16x128xf32>
    %137 = arith.mulf %96, %136 : vector<16x128xf32>
    %138 = arith.addf %135, %137 : vector<16x128xf32>
    %139 = vector.broadcast %33 : f32 to vector<16x128xf32>
    %140 = arith.addf %138, %139 : vector<16x128xf32>
    %cst_9 = arith.constant 0.000000e+00 : f32
    %141 = vector.broadcast %cst_9 : f32 to vector<16x128xf32>
    %142 = arith.maximumf %140, %141 : vector<16x128xf32>
    %143 = vector.broadcast %44 : f32 to vector<16x128xf32>
    %144 = arith.mulf %142, %143 : vector<16x128xf32>
    %145 = arith.addf %118, %144 : vector<16x128xf32>
    %146 = vector.broadcast %45 : f32 to vector<16x128xf32>
    %147 = arith.mulf %142, %146 : vector<16x128xf32>
    %148 = arith.addf %121, %147 : vector<16x128xf32>
    %149 = vector.broadcast %46 : f32 to vector<16x128xf32>
    %150 = arith.mulf %142, %149 : vector<16x128xf32>
    %151 = arith.addf %124, %150 : vector<16x128xf32>
    %152 = vector.broadcast %47 : f32 to vector<16x128xf32>
    %153 = arith.mulf %142, %152 : vector<16x128xf32>
    %154 = arith.addf %127, %153 : vector<16x128xf32>
    %155 = vector.broadcast %2 : f32 to vector<16x128xf32>
    %156 = arith.mulf %87, %155 : vector<16x128xf32>
    %157 = vector.broadcast %10 : f32 to vector<16x128xf32>
    %158 = arith.mulf %90, %157 : vector<16x128xf32>
    %159 = arith.addf %156, %158 : vector<16x128xf32>
    %160 = vector.broadcast %18 : f32 to vector<16x128xf32>
    %161 = arith.mulf %93, %160 : vector<16x128xf32>
    %162 = arith.addf %159, %161 : vector<16x128xf32>
    %163 = vector.broadcast %26 : f32 to vector<16x128xf32>
    %164 = arith.mulf %96, %163 : vector<16x128xf32>
    %165 = arith.addf %162, %164 : vector<16x128xf32>
    %166 = vector.broadcast %34 : f32 to vector<16x128xf32>
    %167 = arith.addf %165, %166 : vector<16x128xf32>
    %cst_10 = arith.constant 0.000000e+00 : f32
    %168 = vector.broadcast %cst_10 : f32 to vector<16x128xf32>
    %169 = arith.maximumf %167, %168 : vector<16x128xf32>
    %170 = vector.broadcast %48 : f32 to vector<16x128xf32>
    %171 = arith.mulf %169, %170 : vector<16x128xf32>
    %172 = arith.addf %145, %171 : vector<16x128xf32>
    %173 = vector.broadcast %49 : f32 to vector<16x128xf32>
    %174 = arith.mulf %169, %173 : vector<16x128xf32>
    %175 = arith.addf %148, %174 : vector<16x128xf32>
    %176 = vector.broadcast %50 : f32 to vector<16x128xf32>
    %177 = arith.mulf %169, %176 : vector<16x128xf32>
    %178 = arith.addf %151, %177 : vector<16x128xf32>
    %179 = vector.broadcast %51 : f32 to vector<16x128xf32>
    %180 = arith.mulf %169, %179 : vector<16x128xf32>
    %181 = arith.addf %154, %180 : vector<16x128xf32>
    %182 = vector.broadcast %3 : f32 to vector<16x128xf32>
    %183 = arith.mulf %87, %182 : vector<16x128xf32>
    %184 = vector.broadcast %11 : f32 to vector<16x128xf32>
    %185 = arith.mulf %90, %184 : vector<16x128xf32>
    %186 = arith.addf %183, %185 : vector<16x128xf32>
    %187 = vector.broadcast %19 : f32 to vector<16x128xf32>
    %188 = arith.mulf %93, %187 : vector<16x128xf32>
    %189 = arith.addf %186, %188 : vector<16x128xf32>
    %190 = vector.broadcast %27 : f32 to vector<16x128xf32>
    %191 = arith.mulf %96, %190 : vector<16x128xf32>
    %192 = arith.addf %189, %191 : vector<16x128xf32>
    %193 = vector.broadcast %35 : f32 to vector<16x128xf32>
    %194 = arith.addf %192, %193 : vector<16x128xf32>
    %cst_11 = arith.constant 0.000000e+00 : f32
    %195 = vector.broadcast %cst_11 : f32 to vector<16x128xf32>
    %196 = arith.maximumf %194, %195 : vector<16x128xf32>
    %197 = vector.broadcast %52 : f32 to vector<16x128xf32>
    %198 = arith.mulf %196, %197 : vector<16x128xf32>
    %199 = arith.addf %172, %198 : vector<16x128xf32>
    %200 = vector.broadcast %53 : f32 to vector<16x128xf32>
    %201 = arith.mulf %196, %200 : vector<16x128xf32>
    %202 = arith.addf %175, %201 : vector<16x128xf32>
    %203 = vector.broadcast %54 : f32 to vector<16x128xf32>
    %204 = arith.mulf %196, %203 : vector<16x128xf32>
    %205 = arith.addf %178, %204 : vector<16x128xf32>
    %206 = vector.broadcast %55 : f32 to vector<16x128xf32>
    %207 = arith.mulf %196, %206 : vector<16x128xf32>
    %208 = arith.addf %181, %207 : vector<16x128xf32>
    %209 = vector.broadcast %4 : f32 to vector<16x128xf32>
    %210 = arith.mulf %87, %209 : vector<16x128xf32>
    %211 = vector.broadcast %12 : f32 to vector<16x128xf32>
    %212 = arith.mulf %90, %211 : vector<16x128xf32>
    %213 = arith.addf %210, %212 : vector<16x128xf32>
    %214 = vector.broadcast %20 : f32 to vector<16x128xf32>
    %215 = arith.mulf %93, %214 : vector<16x128xf32>
    %216 = arith.addf %213, %215 : vector<16x128xf32>
    %217 = vector.broadcast %28 : f32 to vector<16x128xf32>
    %218 = arith.mulf %96, %217 : vector<16x128xf32>
    %219 = arith.addf %216, %218 : vector<16x128xf32>
    %220 = vector.broadcast %36 : f32 to vector<16x128xf32>
    %221 = arith.addf %219, %220 : vector<16x128xf32>
    %cst_12 = arith.constant 0.000000e+00 : f32
    %222 = vector.broadcast %cst_12 : f32 to vector<16x128xf32>
    %223 = arith.maximumf %221, %222 : vector<16x128xf32>
    %224 = vector.broadcast %56 : f32 to vector<16x128xf32>
    %225 = arith.mulf %223, %224 : vector<16x128xf32>
    %226 = arith.addf %199, %225 : vector<16x128xf32>
    %227 = vector.broadcast %57 : f32 to vector<16x128xf32>
    %228 = arith.mulf %223, %227 : vector<16x128xf32>
    %229 = arith.addf %202, %228 : vector<16x128xf32>
    %230 = vector.broadcast %58 : f32 to vector<16x128xf32>
    %231 = arith.mulf %223, %230 : vector<16x128xf32>
    %232 = arith.addf %205, %231 : vector<16x128xf32>
    %233 = vector.broadcast %59 : f32 to vector<16x128xf32>
    %234 = arith.mulf %223, %233 : vector<16x128xf32>
    %235 = arith.addf %208, %234 : vector<16x128xf32>
    %236 = vector.broadcast %5 : f32 to vector<16x128xf32>
    %237 = arith.mulf %87, %236 : vector<16x128xf32>
    %238 = vector.broadcast %13 : f32 to vector<16x128xf32>
    %239 = arith.mulf %90, %238 : vector<16x128xf32>
    %240 = arith.addf %237, %239 : vector<16x128xf32>
    %241 = vector.broadcast %21 : f32 to vector<16x128xf32>
    %242 = arith.mulf %93, %241 : vector<16x128xf32>
    %243 = arith.addf %240, %242 : vector<16x128xf32>
    %244 = vector.broadcast %29 : f32 to vector<16x128xf32>
    %245 = arith.mulf %96, %244 : vector<16x128xf32>
    %246 = arith.addf %243, %245 : vector<16x128xf32>
    %247 = vector.broadcast %37 : f32 to vector<16x128xf32>
    %248 = arith.addf %246, %247 : vector<16x128xf32>
    %cst_13 = arith.constant 0.000000e+00 : f32
    %249 = vector.broadcast %cst_13 : f32 to vector<16x128xf32>
    %250 = arith.maximumf %248, %249 : vector<16x128xf32>
    %251 = vector.broadcast %60 : f32 to vector<16x128xf32>
    %252 = arith.mulf %250, %251 : vector<16x128xf32>
    %253 = arith.addf %226, %252 : vector<16x128xf32>
    %254 = vector.broadcast %61 : f32 to vector<16x128xf32>
    %255 = arith.mulf %250, %254 : vector<16x128xf32>
    %256 = arith.addf %229, %255 : vector<16x128xf32>
    %257 = vector.broadcast %62 : f32 to vector<16x128xf32>
    %258 = arith.mulf %250, %257 : vector<16x128xf32>
    %259 = arith.addf %232, %258 : vector<16x128xf32>
    %260 = vector.broadcast %63 : f32 to vector<16x128xf32>
    %261 = arith.mulf %250, %260 : vector<16x128xf32>
    %262 = arith.addf %235, %261 : vector<16x128xf32>
    %263 = vector.broadcast %6 : f32 to vector<16x128xf32>
    %264 = arith.mulf %87, %263 : vector<16x128xf32>
    %265 = vector.broadcast %14 : f32 to vector<16x128xf32>
    %266 = arith.mulf %90, %265 : vector<16x128xf32>
    %267 = arith.addf %264, %266 : vector<16x128xf32>
    %268 = vector.broadcast %22 : f32 to vector<16x128xf32>
    %269 = arith.mulf %93, %268 : vector<16x128xf32>
    %270 = arith.addf %267, %269 : vector<16x128xf32>
    %271 = vector.broadcast %30 : f32 to vector<16x128xf32>
    %272 = arith.mulf %96, %271 : vector<16x128xf32>
    %273 = arith.addf %270, %272 : vector<16x128xf32>
    %274 = vector.broadcast %38 : f32 to vector<16x128xf32>
    %275 = arith.addf %273, %274 : vector<16x128xf32>
    %cst_14 = arith.constant 0.000000e+00 : f32
    %276 = vector.broadcast %cst_14 : f32 to vector<16x128xf32>
    %277 = arith.maximumf %275, %276 : vector<16x128xf32>
    %278 = vector.broadcast %64 : f32 to vector<16x128xf32>
    %279 = arith.mulf %277, %278 : vector<16x128xf32>
    %280 = arith.addf %253, %279 : vector<16x128xf32>
    %281 = vector.broadcast %65 : f32 to vector<16x128xf32>
    %282 = arith.mulf %277, %281 : vector<16x128xf32>
    %283 = arith.addf %256, %282 : vector<16x128xf32>
    %284 = vector.broadcast %66 : f32 to vector<16x128xf32>
    %285 = arith.mulf %277, %284 : vector<16x128xf32>
    %286 = arith.addf %259, %285 : vector<16x128xf32>
    %287 = vector.broadcast %67 : f32 to vector<16x128xf32>
    %288 = arith.mulf %277, %287 : vector<16x128xf32>
    %289 = arith.addf %262, %288 : vector<16x128xf32>
    %290 = vector.broadcast %7 : f32 to vector<16x128xf32>
    %291 = arith.mulf %87, %290 : vector<16x128xf32>
    %292 = vector.broadcast %15 : f32 to vector<16x128xf32>
    %293 = arith.mulf %90, %292 : vector<16x128xf32>
    %294 = arith.addf %291, %293 : vector<16x128xf32>
    %295 = vector.broadcast %23 : f32 to vector<16x128xf32>
    %296 = arith.mulf %93, %295 : vector<16x128xf32>
    %297 = arith.addf %294, %296 : vector<16x128xf32>
    %298 = vector.broadcast %31 : f32 to vector<16x128xf32>
    %299 = arith.mulf %96, %298 : vector<16x128xf32>
    %300 = arith.addf %297, %299 : vector<16x128xf32>
    %301 = vector.broadcast %39 : f32 to vector<16x128xf32>
    %302 = arith.addf %300, %301 : vector<16x128xf32>
    %cst_15 = arith.constant 0.000000e+00 : f32
    %303 = vector.broadcast %cst_15 : f32 to vector<16x128xf32>
    %304 = arith.maximumf %302, %303 : vector<16x128xf32>
    %305 = vector.broadcast %68 : f32 to vector<16x128xf32>
    %306 = arith.mulf %304, %305 : vector<16x128xf32>
    %307 = arith.addf %280, %306 : vector<16x128xf32>
    %308 = vector.broadcast %69 : f32 to vector<16x128xf32>
    %309 = arith.mulf %304, %308 : vector<16x128xf32>
    %310 = arith.addf %283, %309 : vector<16x128xf32>
    %311 = vector.broadcast %70 : f32 to vector<16x128xf32>
    %312 = arith.mulf %304, %311 : vector<16x128xf32>
    %313 = arith.addf %286, %312 : vector<16x128xf32>
    %314 = vector.broadcast %71 : f32 to vector<16x128xf32>
    %315 = arith.mulf %304, %314 : vector<16x128xf32>
    %316 = arith.addf %289, %315 : vector<16x128xf32>
    %317 = vector.broadcast %80 : f32 to vector<16x128xf32>
    %cst_16 = arith.constant 0.000000e+00 : f32
    %318 = vector.broadcast %cst_16 : f32 to vector<16x128xf32>
    %319 = arith.maximumf %307, %318 : vector<16x128xf32>
    %320 = vector.broadcast %76 : f32 to vector<16x128xf32>
    %321 = arith.mulf %319, %320 : vector<16x128xf32>
    %322 = arith.addf %317, %321 : vector<16x128xf32>
    %cst_17 = arith.constant 0.000000e+00 : f32
    %323 = vector.broadcast %cst_17 : f32 to vector<16x128xf32>
    %324 = arith.maximumf %310, %323 : vector<16x128xf32>
    %325 = vector.broadcast %77 : f32 to vector<16x128xf32>
    %326 = arith.mulf %324, %325 : vector<16x128xf32>
    %327 = arith.addf %322, %326 : vector<16x128xf32>
    %cst_18 = arith.constant 0.000000e+00 : f32
    %328 = vector.broadcast %cst_18 : f32 to vector<16x128xf32>
    %329 = arith.maximumf %313, %328 : vector<16x128xf32>
    %330 = vector.broadcast %78 : f32 to vector<16x128xf32>
    %331 = arith.mulf %329, %330 : vector<16x128xf32>
    %332 = arith.addf %327, %331 : vector<16x128xf32>
    %cst_19 = arith.constant 0.000000e+00 : f32
    %333 = vector.broadcast %cst_19 : f32 to vector<16x128xf32>
    %334 = arith.maximumf %316, %333 : vector<16x128xf32>
    %335 = vector.broadcast %79 : f32 to vector<16x128xf32>
    %336 = arith.mulf %334, %335 : vector<16x128xf32>
    %337 = arith.addf %332, %336 : vector<16x128xf32>
    %338 = arith.index_cast %84 : i32 to index
    %c0_20 = arith.constant 0 : index
    %339 = vector.load %arg3[%338, %c0_20] : memref<16x128xf32, #tpu.memory_space<vmem>>, vector<16x128xf32>
    tpu.vector_store %arg3[%338, %c0_20], %337 {strides = array<i32>} : memref<16x128xf32, #tpu.memory_space<vmem>>, vector<16x128xf32>,
    %c1_i32_21 = arith.constant 1 : i32
    return
  }
  func.func @transform_0(%arg0: i32) -> i32 {
    %c0_i32 = arith.constant 0 : i32
    %c0_i32_0 = arith.constant 0 : i32
    return %c0_i32 : i32
  }
  func.func @transform_1(%arg0: i32) -> (i32, i32, i32) {
    %c0_i32 = arith.constant 0 : i32
    %c0_i32_0 = arith.constant 0 : i32
    %c0_i32_1 = arith.constant 0 : i32
    return %c0_i32, %arg0, %c0_i32_0 : i32, i32, i32
  }
  func.func @transform_2(%arg0: i32) -> (i32, i32) {
    %c0_i32 = arith.constant 0 : i32
    %c0_i32_0 = arith.constant 0 : i32
    return %arg0, %c0_i32 : i32, i32
  }
}

module attributes {stable_mosaic.version = 11 : i64} {
  func.func @critic_kernel(%arg0: i32, %arg1: memref<81xf32, #tpu.memory_space<smem>>, %arg2: memref<4x16x128xf32, #tpu.memory_space<vmem>>, %arg3: memref<16x128xf32, #tpu.memory_space<vmem>>) attributes {dimension_semantics = [#tpu.dimension_semantics<parallel>], iteration_bounds = array<i64: 1>, scalar_prefetch = 0 : i64, scratch_operands = 0 : i64, tpu.core_type = #tpu.core_type<tc>, window_params = [{transform_indices = @transform_0, window_bounds = array<i64: 81>}, {transform_indices = @transform_1, window_bounds = array<i64: 4, 16, 128>}, {transform_indices = @transform_2, window_bounds = array<i64: 16, 128>}]} {
    %c0 = arith.constant 0 : index
    %0 = memref.load %arg1[%c0] : memref<81xf32, #tpu.memory_space<smem>>
    %c1 = arith.constant 1 : index
    %1 = memref.load %arg1[%c1] : memref<81xf32, #tpu.memory_space<smem>>
    %c2 = arith.constant 2 : index
    %2 = memref.load %arg1[%c2] : memref<81xf32, #tpu.memory_space<smem>>
    %c3 = arith.constant 3 : index
    %3 = memref.load %arg1[%c3] : memref<81xf32, #tpu.memory_space<smem>>
    %c4 = arith.constant 4 : index
    %4 = memref.load %arg1[%c4] : memref<81xf32, #tpu.memory_space<smem>>
    %c5 = arith.constant 5 : index
    %5 = memref.load %arg1[%c5] : memref<81xf32, #tpu.memory_space<smem>>
    %c6 = arith.constant 6 : index
    %6 = memref.load %arg1[%c6] : memref<81xf32, #tpu.memory_space<smem>>
    %c7 = arith.constant 7 : index
    %7 = memref.load %arg1[%c7] : memref<81xf32, #tpu.memory_space<smem>>
    %c8 = arith.constant 8 : index
    %8 = memref.load %arg1[%c8] : memref<81xf32, #tpu.memory_space<smem>>
    %c9 = arith.constant 9 : index
    %9 = memref.load %arg1[%c9] : memref<81xf32, #tpu.memory_space<smem>>
    %c10 = arith.constant 10 : index
    %10 = memref.load %arg1[%c10] : memref<81xf32, #tpu.memory_space<smem>>
    %c11 = arith.constant 11 : index
    %11 = memref.load %arg1[%c11] : memref<81xf32, #tpu.memory_space<smem>>
    %c12 = arith.constant 12 : index
    %12 = memref.load %arg1[%c12] : memref<81xf32, #tpu.memory_space<smem>>
    %c13 = arith.constant 13 : index
    %13 = memref.load %arg1[%c13] : memref<81xf32, #tpu.memory_space<smem>>
    %c14 = arith.constant 14 : index
    %14 = memref.load %arg1[%c14] : memref<81xf32, #tpu.memory_space<smem>>
    %c15 = arith.constant 15 : index
    %15 = memref.load %arg1[%c15] : memref<81xf32, #tpu.memory_space<smem>>
    %c16 = arith.constant 16 : index
    %16 = memref.load %arg1[%c16] : memref<81xf32, #tpu.memory_space<smem>>
    %c17 = arith.constant 17 : index
    %17 = memref.load %arg1[%c17] : memref<81xf32, #tpu.memory_space<smem>>
    %c18 = arith.constant 18 : index
    %18 = memref.load %arg1[%c18] : memref<81xf32, #tpu.memory_space<smem>>
    %c19 = arith.constant 19 : index
    %19 = memref.load %arg1[%c19] : memref<81xf32, #tpu.memory_space<smem>>
    %c20 = arith.constant 20 : index
    %20 = memref.load %arg1[%c20] : memref<81xf32, #tpu.memory_space<smem>>
    %c21 = arith.constant 21 : index
    %21 = memref.load %arg1[%c21] : memref<81xf32, #tpu.memory_space<smem>>
    %c22 = arith.constant 22 : index
    %22 = memref.load %arg1[%c22] : memref<81xf32, #tpu.memory_space<smem>>
    %c23 = arith.constant 23 : index
    %23 = memref.load %arg1[%c23] : memref<81xf32, #tpu.memory_space<smem>>
    %c24 = arith.constant 24 : index
    %24 = memref.load %arg1[%c24] : memref<81xf32, #tpu.memory_space<smem>>
    %c25 = arith.constant 25 : index
    %25 = memref.load %arg1[%c25] : memref<81xf32, #tpu.memory_space<smem>>
    %c26 = arith.constant 26 : index
    %26 = memref.load %arg1[%c26] : memref<81xf32, #tpu.memory_space<smem>>
    %c27 = arith.constant 27 : index
    %27 = memref.load %arg1[%c27] : memref<81xf32, #tpu.memory_space<smem>>
    %c28 = arith.constant 28 : index
    %28 = memref.load %arg1[%c28] : memref<81xf32, #tpu.memory_space<smem>>
    %c29 = arith.constant 29 : index
    %29 = memref.load %arg1[%c29] : memref<81xf32, #tpu.memory_space<smem>>
    %c30 = arith.constant 30 : index
    %30 = memref.load %arg1[%c30] : memref<81xf32, #tpu.memory_space<smem>>
    %c31 = arith.constant 31 : index
    %31 = memref.load %arg1[%c31] : memref<81xf32, #tpu.memory_space<smem>>
    %c32 = arith.constant 32 : index
    %32 = memref.load %arg1[%c32] : memref<81xf32, #tpu.memory_space<smem>>
    %c33 = arith.constant 33 : index
    %33 = memref.load %arg1[%c33] : memref<81xf32, #tpu.memory_space<smem>>
    %c34 = arith.constant 34 : index
    %34 = memref.load %arg1[%c34] : memref<81xf32, #tpu.memory_space<smem>>
    %c35 = arith.constant 35 : index
    %35 = memref.load %arg1[%c35] : memref<81xf32, #tpu.memory_space<smem>>
    %c36 = arith.constant 36 : index
    %36 = memref.load %arg1[%c36] : memref<81xf32, #tpu.memory_space<smem>>
    %c37 = arith.constant 37 : index
    %37 = memref.load %arg1[%c37] : memref<81xf32, #tpu.memory_space<smem>>
    %c38 = arith.constant 38 : index
    %38 = memref.load %arg1[%c38] : memref<81xf32, #tpu.memory_space<smem>>
    %c39 = arith.constant 39 : index
    %39 = memref.load %arg1[%c39] : memref<81xf32, #tpu.memory_space<smem>>
    %c40 = arith.constant 40 : index
    %40 = memref.load %arg1[%c40] : memref<81xf32, #tpu.memory_space<smem>>
    %c41 = arith.constant 41 : index
    %41 = memref.load %arg1[%c41] : memref<81xf32, #tpu.memory_space<smem>>
    %c42 = arith.constant 42 : index
    %42 = memref.load %arg1[%c42] : memref<81xf32, #tpu.memory_space<smem>>
    %c43 = arith.constant 43 : index
    %43 = memref.load %arg1[%c43] : memref<81xf32, #tpu.memory_space<smem>>
    %c44 = arith.constant 44 : index
    %44 = memref.load %arg1[%c44] : memref<81xf32, #tpu.memory_space<smem>>
    %c45 = arith.constant 45 : index
    %45 = memref.load %arg1[%c45] : memref<81xf32, #tpu.memory_space<smem>>
    %c46 = arith.constant 46 : index
    %46 = memref.load %arg1[%c46] : memref<81xf32, #tpu.memory_space<smem>>
    %c47 = arith.constant 47 : index
    %47 = memref.load %arg1[%c47] : memref<81xf32, #tpu.memory_space<smem>>
    %c48 = arith.constant 48 : index
    %48 = memref.load %arg1[%c48] : memref<81xf32, #tpu.memory_space<smem>>
    %c49 = arith.constant 49 : index
    %49 = memref.load %arg1[%c49] : memref<81xf32, #tpu.memory_space<smem>>
    %c50 = arith.constant 50 : index
    %50 = memref.load %arg1[%c50] : memref<81xf32, #tpu.memory_space<smem>>
    %c51 = arith.constant 51 : index
    %51 = memref.load %arg1[%c51] : memref<81xf32, #tpu.memory_space<smem>>
    %c52 = arith.constant 52 : index
    %52 = memref.load %arg1[%c52] : memref<81xf32, #tpu.memory_space<smem>>
    %c53 = arith.constant 53 : index
    %53 = memref.load %arg1[%c53] : memref<81xf32, #tpu.memory_space<smem>>
    %c54 = arith.constant 54 : index
    %54 = memref.load %arg1[%c54] : memref<81xf32, #tpu.memory_space<smem>>
    %c55 = arith.constant 55 : index
    %55 = memref.load %arg1[%c55] : memref<81xf32, #tpu.memory_space<smem>>
    %c56 = arith.constant 56 : index
    %56 = memref.load %arg1[%c56] : memref<81xf32, #tpu.memory_space<smem>>
    %c57 = arith.constant 57 : index
    %57 = memref.load %arg1[%c57] : memref<81xf32, #tpu.memory_space<smem>>
    %c58 = arith.constant 58 : index
    %58 = memref.load %arg1[%c58] : memref<81xf32, #tpu.memory_space<smem>>
    %c59 = arith.constant 59 : index
    %59 = memref.load %arg1[%c59] : memref<81xf32, #tpu.memory_space<smem>>
    %c60 = arith.constant 60 : index
    %60 = memref.load %arg1[%c60] : memref<81xf32, #tpu.memory_space<smem>>
    %c61 = arith.constant 61 : index
    %61 = memref.load %arg1[%c61] : memref<81xf32, #tpu.memory_space<smem>>
    %c62 = arith.constant 62 : index
    %62 = memref.load %arg1[%c62] : memref<81xf32, #tpu.memory_space<smem>>
    %c63 = arith.constant 63 : index
    %63 = memref.load %arg1[%c63] : memref<81xf32, #tpu.memory_space<smem>>
    %c64 = arith.constant 64 : index
    %64 = memref.load %arg1[%c64] : memref<81xf32, #tpu.memory_space<smem>>
    %c65 = arith.constant 65 : index
    %65 = memref.load %arg1[%c65] : memref<81xf32, #tpu.memory_space<smem>>
    %c66 = arith.constant 66 : index
    %66 = memref.load %arg1[%c66] : memref<81xf32, #tpu.memory_space<smem>>
    %c67 = arith.constant 67 : index
    %67 = memref.load %arg1[%c67] : memref<81xf32, #tpu.memory_space<smem>>
    %c68 = arith.constant 68 : index
    %68 = memref.load %arg1[%c68] : memref<81xf32, #tpu.memory_space<smem>>
    %c69 = arith.constant 69 : index
    %69 = memref.load %arg1[%c69] : memref<81xf32, #tpu.memory_space<smem>>
    %c70 = arith.constant 70 : index
    %70 = memref.load %arg1[%c70] : memref<81xf32, #tpu.memory_space<smem>>
    %c71 = arith.constant 71 : index
    %71 = memref.load %arg1[%c71] : memref<81xf32, #tpu.memory_space<smem>>
    %c72 = arith.constant 72 : index
    %72 = memref.load %arg1[%c72] : memref<81xf32, #tpu.memory_space<smem>>
    %c73 = arith.constant 73 : index
    %73 = memref.load %arg1[%c73] : memref<81xf32, #tpu.memory_space<smem>>
    %c74 = arith.constant 74 : index
    %74 = memref.load %arg1[%c74] : memref<81xf32, #tpu.memory_space<smem>>
    %c75 = arith.constant 75 : index
    %75 = memref.load %arg1[%c75] : memref<81xf32, #tpu.memory_space<smem>>
    %c76 = arith.constant 76 : index
    %76 = memref.load %arg1[%c76] : memref<81xf32, #tpu.memory_space<smem>>
    %c77 = arith.constant 77 : index
    %77 = memref.load %arg1[%c77] : memref<81xf32, #tpu.memory_space<smem>>
    %c78 = arith.constant 78 : index
    %78 = memref.load %arg1[%c78] : memref<81xf32, #tpu.memory_space<smem>>
    %c79 = arith.constant 79 : index
    %79 = memref.load %arg1[%c79] : memref<81xf32, #tpu.memory_space<smem>>
    %c80 = arith.constant 80 : index
    %80 = memref.load %arg1[%c80] : memref<81xf32, #tpu.memory_space<smem>>
    %c0_i32 = arith.constant 0 : i32
    %c1_i32 = arith.constant 1 : i32
    %81 = arith.muli %c0_i32, %c1_i32 : i32
    %c0_i32_0 = arith.constant 0 : i32
    %82 = arith.addi %c0_i32_0, %81 : i32
    %c16_i32 = arith.constant 16 : i32
    %83 = arith.muli %82, %c16_i32 : i32
    %84 = tpu.assume_multiple %83, 16 : i32
    %c0_1 = arith.constant 0 : index
    %85 = arith.index_cast %84 : i32 to index
    %c0_2 = arith.constant 0 : index
    %86 = vector.load %arg2[%c0_1, %85, %c0_2] : memref<4x16x128xf32, #tpu.memory_space<vmem>>, vector<1x16x128xf32>
    %87 = vector.shape_cast %86 : vector<1x16x128xf32> to vector<16x128xf32>
    %c1_3 = arith.constant 1 : index
    %88 = arith.index_cast %84 : i32 to index
    %c0_4 = arith.constant 0 : index
    %89 = vector.load %arg2[%c1_3, %88, %c0_4] : memref<4x16x128xf32, #tpu.memory_space<vmem>>, vector<1x16x128xf32>
    %90 = vector.shape_cast %89 : vector<1x16x128xf32> to vector<16x128xf32>
    %c2_5 = arith.constant 2 : index
    %91 = arith.index_cast %84 : i32 to index
    %c0_6 = arith.constant 0 : index
    %92 = vector.load %arg2[%c2_5, %91, %c0_6] : memref<4x16x128xf32, #tpu.memory_space<vmem>>, vector<1x16x128xf32>
    %93 = vector.shape_cast %92 : vector<1x16x128xf32> to vector<16x128xf32>
    %c3_7 = arith.constant 3 : index
    %94 = arith.index_cast %84 : i32 to index
    %c0_8 = arith.constant 0 : index
    %95 = vector.load %arg2[%c3_7, %94, %c0_8] : memref<4x16x128xf32, #tpu.memory_space<vmem>>, vector<1x16x128xf32>
    %96 = vector.shape_cast %95 : vector<1x16x128xf32> to vector<16x128xf32>
    %97 = vector.broadcast %72 : f32 to vector<16x128xf32>
    %98 = vector.broadcast %73 : f32 to vector<16x128xf32>
    %99 = vector.broadcast %74 : f32 to vector<16x128xf32>
    %100 = vector.broadcast %75 : f32 to vector<16x128xf32>
    %101 = vector.broadcast %0 : f32 to vector<16x128xf32>
    %102 = arith.mulf %87, %101 : vector<16x128xf32>
    %103 = vector.broadcast %8 : f32 to vector<16x128xf32>
    %104 = arith.mulf %90, %103 : vector<16x128xf32>
    %105 = arith.addf %102, %104 : vector<16x128xf32>
    %106 = vector.broadcast %16 : f32 to vector<16x128xf32>
    %107 = arith.mulf %93, %106 : vector<16x128xf32>
    %108 = arith.addf %105, %107 : vector<16x128xf32>
    %109 = vector.broadcast %24 : f32 to vector<16x128xf32>
    %110 = arith.mulf %96, %109 : vector<16x128xf32>
    %111 = arith.addf %108, %110 : vector<16x128xf32>
    %112 = vector.broadcast %32 : f32 to vector<16x128xf32>
    %113 = arith.addf %111, %112 : vector<16x128xf32>
    %cst = arith.constant 0.000000e+00 : f32
    %114 = vector.broadcast %cst : f32 to vector<16x128xf32>
    %115 = arith.maximumf %113, %114 : vector<16x128xf32>
    %116 = vector.broadcast %40 : f32 to vector<16x128xf32>
    %117 = arith.mulf %115, %116 : vector<16x128xf32>
    %118 = arith.addf %97, %117 : vector<16x128xf32>
    %119 = vector.broadcast %41 : f32 to vector<16x128xf32>
    %120 = arith.mulf %115, %119 : vector<16x128xf32>
    %121 = arith.addf %98, %120 : vector<16x128xf32>
    %122 = vector.broadcast %42 : f32 to vector<16x128xf32>
    %123 = arith.mulf %115, %122 : vector<16x128xf32>
    %124 = arith.addf %99, %123 : vector<16x128xf32>
    %125 = vector.broadcast %43 : f32 to vector<16x128xf32>
    %126 = arith.mulf %115, %125 : vector<16x128xf32>
    %127 = arith.addf %100, %126 : vector<16x128xf32>
    %128 = vector.broadcast %1 : f32 to vector<16x128xf32>
    %129 = arith.mulf %87, %128 : vector<16x128xf32>
    %130 = vector.broadcast %9 : f32 to vector<16x128xf32>
    %131 = arith.mulf %90, %130 : vector<16x128xf32>
    %132 = arith.addf %129, %131 : vector<16x128xf32>
    %133 = vector.broadcast %17 : f32 to vector<16x128xf32>
    %134 = arith.mulf %93, %133 : vector<16x128xf32>
    %135 = arith.addf %132, %134 : vector<16x128xf32>
    %136 = vector.broadcast %25 : f32 to vector<16x128xf32>
    %137 = arith.mulf %96, %136 : vector<16x128xf32>
    %138 = arith.addf %135, %137 : vector<16x128xf32>
    %139 = vector.broadcast %33 : f32 to vector<16x128xf32>
    %140 = arith.addf %138, %139 : vector<16x128xf32>
    %cst_9 = arith.constant 0.000000e+00 : f32
    %141 = vector.broadcast %cst_9 : f32 to vector<16x128xf32>
    %142 = arith.maximumf %140, %141 : vector<16x128xf32>
    %143 = vector.broadcast %44 : f32 to vector<16x128xf32>
    %144 = arith.mulf %142, %143 : vector<16x128xf32>
    %145 = arith.addf %118, %144 : vector<16x128xf32>
    %146 = vector.broadcast %45 : f32 to vector<16x128xf32>
    %147 = arith.mulf %142, %146 : vector<16x128xf32>
    %148 = arith.addf %121, %147 : vector<16x128xf32>
    %149 = vector.broadcast %46 : f32 to vector<16x128xf32>
    %150 = arith.mulf %142, %149 : vector<16x128xf32>
    %151 = arith.addf %124, %150 : vector<16x128xf32>
    %152 = vector.broadcast %47 : f32 to vector<16x128xf32>
    %153 = arith.mulf %142, %152 : vector<16x128xf32>
    %154 = arith.addf %127, %153 : vector<16x128xf32>
    %155 = vector.broadcast %2 : f32 to vector<16x128xf32>
    %156 = arith.mulf %87, %155 : vector<16x128xf32>
    %157 = vector.broadcast %10 : f32 to vector<16x128xf32>
    %158 = arith.mulf %90, %157 : vector<16x128xf32>
    %159 = arith.addf %156, %158 : vector<16x128xf32>
    %160 = vector.broadcast %18 : f32 to vector<16x128xf32>
    %161 = arith.mulf %93, %160 : vector<16x128xf32>
    %162 = arith.addf %159, %161 : vector<16x128xf32>
    %163 = vector.broadcast %26 : f32 to vector<16x128xf32>
    %164 = arith.mulf %96, %163 : vector<16x128xf32>
    %165 = arith.addf %162, %164 : vector<16x128xf32>
    %166 = vector.broadcast %34 : f32 to vector<16x128xf32>
    %167 = arith.addf %165, %166 : vector<16x128xf32>
    %cst_10 = arith.constant 0.000000e+00 : f32
    %168 = vector.broadcast %cst_10 : f32 to vector<16x128xf32>
    %169 = arith.maximumf %167, %168 : vector<16x128xf32>
    %170 = vector.broadcast %48 : f32 to vector<16x128xf32>
    %171 = arith.mulf %169, %170 : vector<16x128xf32>
    %172 = arith.addf %145, %171 : vector<16x128xf32>
    %173 = vector.broadcast %49 : f32 to vector<16x128xf32>
    %174 = arith.mulf %169, %173 : vector<16x128xf32>
    %175 = arith.addf %148, %174 : vector<16x128xf32>
    %176 = vector.broadcast %50 : f32 to vector<16x128xf32>
    %177 = arith.mulf %169, %176 : vector<16x128xf32>
    %178 = arith.addf %151, %177 : vector<16x128xf32>
    %179 = vector.broadcast %51 : f32 to vector<16x128xf32>
    %180 = arith.mulf %169, %179 : vector<16x128xf32>
    %181 = arith.addf %154, %180 : vector<16x128xf32>
    %182 = vector.broadcast %3 : f32 to vector<16x128xf32>
    %183 = arith.mulf %87, %182 : vector<16x128xf32>
    %184 = vector.broadcast %11 : f32 to vector<16x128xf32>
    %185 = arith.mulf %90, %184 : vector<16x128xf32>
    %186 = arith.addf %183, %185 : vector<16x128xf32>
    %187 = vector.broadcast %19 : f32 to vector<16x128xf32>
    %188 = arith.mulf %93, %187 : vector<16x128xf32>
    %189 = arith.addf %186, %188 : vector<16x128xf32>
    %190 = vector.broadcast %27 : f32 to vector<16x128xf32>
    %191 = arith.mulf %96, %190 : vector<16x128xf32>
    %192 = arith.addf %189, %191 : vector<16x128xf32>
    %193 = vector.broadcast %35 : f32 to vector<16x128xf32>
    %194 = arith.addf %192, %193 : vector<16x128xf32>
    %cst_11 = arith.constant 0.000000e+00 : f32
    %195 = vector.broadcast %cst_11 : f32 to vector<16x128xf32>
    %196 = arith.maximumf %194, %195 : vector<16x128xf32>
    %197 = vector.broadcast %52 : f32 to vector<16x128xf32>
    %198 = arith.mulf %196, %197 : vector<16x128xf32>
    %199 = arith.addf %172, %198 : vector<16x128xf32>
    %200 = vector.broadcast %53 : f32 to vector<16x128xf32>
    %201 = arith.mulf %196, %200 : vector<16x128xf32>
    %202 = arith.addf %175, %201 : vector<16x128xf32>
    %203 = vector.broadcast %54 : f32 to vector<16x128xf32>
    %204 = arith.mulf %196, %203 : vector<16x128xf32>
    %205 = arith.addf %178, %204 : vector<16x128xf32>
    %206 = vector.broadcast %55 : f32 to vector<16x128xf32>
    %207 = arith.mulf %196, %206 : vector<16x128xf32>
    %208 = arith.addf %181, %207 : vector<16x128xf32>
    %209 = vector.broadcast %4 : f32 to vector<16x128xf32>
    %210 = arith.mulf %87, %209 : vector<16x128xf32>
    %211 = vector.broadcast %12 : f32 to vector<16x128xf32>
    %212 = arith.mulf %90, %211 : vector<16x128xf32>
    %213 = arith.addf %210, %212 : vector<16x128xf32>
    %214 = vector.broadcast %20 : f32 to vector<16x128xf32>
    %215 = arith.mulf %93, %214 : vector<16x128xf32>
    %216 = arith.addf %213, %215 : vector<16x128xf32>
    %217 = vector.broadcast %28 : f32 to vector<16x128xf32>
    %218 = arith.mulf %96, %217 : vector<16x128xf32>
    %219 = arith.addf %216, %218 : vector<16x128xf32>
    %220 = vector.broadcast %36 : f32 to vector<16x128xf32>
    %221 = arith.addf %219, %220 : vector<16x128xf32>
    %cst_12 = arith.constant 0.000000e+00 : f32
    %222 = vector.broadcast %cst_12 : f32 to vector<16x128xf32>
    %223 = arith.maximumf %221, %222 : vector<16x128xf32>
    %224 = vector.broadcast %56 : f32 to vector<16x128xf32>
    %225 = arith.mulf %223, %224 : vector<16x128xf32>
    %226 = arith.addf %199, %225 : vector<16x128xf32>
    %227 = vector.broadcast %57 : f32 to vector<16x128xf32>
    %228 = arith.mulf %223, %227 : vector<16x128xf32>
    %229 = arith.addf %202, %228 : vector<16x128xf32>
    %230 = vector.broadcast %58 : f32 to vector<16x128xf32>
    %231 = arith.mulf %223, %230 : vector<16x128xf32>
    %232 = arith.addf %205, %231 : vector<16x128xf32>
    %233 = vector.broadcast %59 : f32 to vector<16x128xf32>
    %234 = arith.mulf %223, %233 : vector<16x128xf32>
    %235 = arith.addf %208, %234 : vector<16x128xf32>
    %236 = vector.broadcast %5 : f32 to vector<16x128xf32>
    %237 = arith.mulf %87, %236 : vector<16x128xf32>
    %238 = vector.broadcast %13 : f32 to vector<16x128xf32>
    %239 = arith.mulf %90, %238 : vector<16x128xf32>
    %240 = arith.addf %237, %239 : vector<16x128xf32>
    %241 = vector.broadcast %21 : f32 to vector<16x128xf32>
    %242 = arith.mulf %93, %241 : vector<16x128xf32>
    %243 = arith.addf %240, %242 : vector<16x128xf32>
    %244 = vector.broadcast %29 : f32 to vector<16x128xf32>
    %245 = arith.mulf %96, %244 : vector<16x128xf32>
    %246 = arith.addf %243, %245 : vector<16x128xf32>
    %247 = vector.broadcast %37 : f32 to vector<16x128xf32>
    %248 = arith.addf %246, %247 : vector<16x128xf32>
    %cst_13 = arith.constant 0.000000e+00 : f32
    %249 = vector.broadcast %cst_13 : f32 to vector<16x128xf32>
    %250 = arith.maximumf %248, %249 : vector<16x128xf32>
    %251 = vector.broadcast %60 : f32 to vector<16x128xf32>
    %252 = arith.mulf %250, %251 : vector<16x128xf32>
    %253 = arith.addf %226, %252 : vector<16x128xf32>
    %254 = vector.broadcast %61 : f32 to vector<16x128xf32>
    %255 = arith.mulf %250, %254 : vector<16x128xf32>
    %256 = arith.addf %229, %255 : vector<16x128xf32>
    %257 = vector.broadcast %62 : f32 to vector<16x128xf32>
    %258 = arith.mulf %250, %257 : vector<16x128xf32>
    %259 = arith.addf %232, %258 : vector<16x128xf32>
    %260 = vector.broadcast %63 : f32 to vector<16x128xf32>
    %261 = arith.mulf %250, %260 : vector<16x128xf32>
    %262 = arith.addf %235, %261 : vector<16x128xf32>
    %263 = vector.broadcast %6 : f32 to vector<16x128xf32>
    %264 = arith.mulf %87, %263 : vector<16x128xf32>
    %265 = vector.broadcast %14 : f32 to vector<16x128xf32>
    %266 = arith.mulf %90, %265 : vector<16x128xf32>
    %267 = arith.addf %264, %266 : vector<16x128xf32>
    %268 = vector.broadcast %22 : f32 to vector<16x128xf32>
    %269 = arith.mulf %93, %268 : vector<16x128xf32>
    %270 = arith.addf %267, %269 : vector<16x128xf32>
    %271 = vector.broadcast %30 : f32 to vector<16x128xf32>
    %272 = arith.mulf %96, %271 : vector<16x128xf32>
    %273 = arith.addf %270, %272 : vector<16x128xf32>
    %274 = vector.broadcast %38 : f32 to vector<16x128xf32>
    %275 = arith.addf %273, %274 : vector<16x128xf32>
    %cst_14 = arith.constant 0.000000e+00 : f32
    %276 = vector.broadcast %cst_14 : f32 to vector<16x128xf32>
    %277 = arith.maximumf %275, %276 : vector<16x128xf32>
    %278 = vector.broadcast %64 : f32 to vector<16x128xf32>
    %279 = arith.mulf %277, %278 : vector<16x128xf32>
    %280 = arith.addf %253, %279 : vector<16x128xf32>
    %281 = vector.broadcast %65 : f32 to vector<16x128xf32>
    %282 = arith.mulf %277, %281 : vector<16x128xf32>
    %283 = arith.addf %256, %282 : vector<16x128xf32>
    %284 = vector.broadcast %66 : f32 to vector<16x128xf32>
    %285 = arith.mulf %277, %284 : vector<16x128xf32>
    %286 = arith.addf %259, %285 : vector<16x128xf32>
    %287 = vector.broadcast %67 : f32 to vector<16x128xf32>
    %288 = arith.mulf %277, %287 : vector<16x128xf32>
    %289 = arith.addf %262, %288 : vector<16x128xf32>
    %290 = vector.broadcast %7 : f32 to vector<16x128xf32>
    %291 = arith.mulf %87, %290 : vector<16x128xf32>
    %292 = vector.broadcast %15 : f32 to vector<16x128xf32>
    %293 = arith.mulf %90, %292 : vector<16x128xf32>
    %294 = arith.addf %291, %293 : vector<16x128xf32>
    %295 = vector.broadcast %23 : f32 to vector<16x128xf32>
    %296 = arith.mulf %93, %295 : vector<16x128xf32>
    %297 = arith.addf %294, %296 : vector<16x128xf32>
    %298 = vector.broadcast %31 : f32 to vector<16x128xf32>
    %299 = arith.mulf %96, %298 : vector<16x128xf32>
    %300 = arith.addf %297, %299 : vector<16x128xf32>
    %301 = vector.broadcast %39 : f32 to vector<16x128xf32>
    %302 = arith.addf %300, %301 : vector<16x128xf32>
    %cst_15 = arith.constant 0.000000e+00 : f32
    %303 = vector.broadcast %cst_15 : f32 to vector<16x128xf32>
    %304 = arith.maximumf %302, %303 : vector<16x128xf32>
    %305 = vector.broadcast %68 : f32 to vector<16x128xf32>
    %306 = arith.mulf %304, %305 : vector<16x128xf32>
    %307 = arith.addf %280, %306 : vector<16x128xf32>
    %308 = vector.broadcast %69 : f32 to vector<16x128xf32>
    %309 = arith.mulf %304, %308 : vector<16x128xf32>
    %310 = arith.addf %283, %309 : vector<16x128xf32>
    %311 = vector.broadcast %70 : f32 to vector<16x128xf32>
    %312 = arith.mulf %304, %311 : vector<16x128xf32>
    %313 = arith.addf %286, %312 : vector<16x128xf32>
    %314 = vector.broadcast %71 : f32 to vector<16x128xf32>
    %315 = arith.mulf %304, %314 : vector<16x128xf32>
    %316 = arith.addf %289, %315 : vector<16x128xf32>
    %317 = vector.broadcast %80 : f32 to vector<16x128xf32>
    %cst_16 = arith.constant 0.000000e+00 : f32
    %318 = vector.broadcast %cst_16 : f32 to vector<16x128xf32>
    %319 = arith.maximumf %307, %318 : vector<16x128xf32>
    %320 = vector.broadcast %76 : f32 to vector<16x128xf32>
    %321 = arith.mulf %319, %320 : vector<16x128xf32>
    %322 = arith.addf %317, %321 : vector<16x128xf32>
    %cst_17 = arith.constant 0.000000e+00 : f32
    %323 = vector.broadcast %cst_17 : f32 to vector<16x128xf32>
    %324 = arith.maximumf %310, %323 : vector<16x128xf32>
    %325 = vector.broadcast %77 : f32 to vector<16x128xf32>
    %326 = arith.mulf %324, %325 : vector<16x128xf32>
    %327 = arith.addf %322, %326 : vector<16x128xf32>
    %cst_18 = arith.constant 0.000000e+00 : f32
    %328 = vector.broadcast %cst_18 : f32 to vector<16x128xf32>
    %329 = arith.maximumf %313, %328 : vector<16x128xf32>
    %330 = vector.broadcast %78 : f32 to vector<16x128xf32>
    %331 = arith.mulf %329, %330 : vector<16x128xf32>
    %332 = arith.addf %327, %331 : vector<16x128xf32>
    %cst_19 = arith.constant 0.000000e+00 : f32
    %333 = vector.broadcast %cst_19 : f32 to vector<16x128xf32>
    %334 = arith.maximumf %316, %333 : vector<16x128xf32>
    %335 = vector.broadcast %79 : f32 to vector<16x128xf32>
    %336 = arith.mulf %334, %335 : vector<16x128xf32>
    %337 = arith.addf %332, %336 : vector<16x128xf32>
    %338 = arith.index_cast %84 : i32 to index
    %c0_20 = arith.constant 0 : index
    %339 = vector.load %arg3[%338, %c0_20] : memref<16x128xf32, #tpu.memory_space<vmem>>, vector<16x128xf32>
    tpu.vector_store %arg3[%338, %c0_20], %337 {strides = array<i32>} : memref<16x128xf32, #tpu.memory_space<vmem>>, vector<16x128xf32>,
    %c1_i32_21 = arith.constant 1 : i32
    return
  }
  func.func @transform_0(%arg0: i32) -> i32 {
    %c0_i32 = arith.constant 0 : i32
    %c0_i32_0 = arith.constant 0 : i32
    return %c0_i32 : i32
  }
  func.func @transform_1(%arg0: i32) -> (i32, i32, i32) {
    %c0_i32 = arith.constant 0 : i32
    %c0_i32_0 = arith.constant 0 : i32
    %c0_i32_1 = arith.constant 0 : i32
    return %c0_i32, %arg0, %c0_i32_0 : i32, i32, i32
  }
  func.func @transform_2(%arg0: i32) -> (i32, i32) {
    %c0_i32 = arith.constant 0 : i32
    %c0_i32_0 = arith.constant 0 : i32
    return %arg0, %c0_i32 : i32, i32
  }
}

</mosaic_0001>

<llo_original>
// kernel: _lambda_.1
$region0: #{_lambda_.1}
  #allocation0 [shape = 'u32[]', space=smem, size = 0x4, offset = 0x4, fixed_abs, tag = 'smem constant byte address 0x4 - core index']
  #allocation1 [shape = 'u32[72,128]{1,0:T(1,128)}', space=vmem, size = 0x9000, scoped, tag = 'internal scratch']
  %s0 = inlined_call_operand.vmem [shape: f32[81], index: 0, kind: input, shape index: {}]
  %s1 = inlined_call_operand.vmem [shape: f32[4,16,128], index: 1, kind: input, shape index: {}]
  %s2 = inlined_call_operand.vmem [shape: f32[16,128], index: 2, kind: output, shape index: {}]
  %s3 = sld [smem:[#allocation0]]
  $region22: #{_lambda_.1} parent=0
    _
  %s5 = ssub.s32 1, %s3
  %s6 = scalar_select 0, %s5, %s3
  $region1: #{_lambda_.1} parent=0
    #allocation2 [shape = 'u8[512]{0}', space=smem, size = 0x200, scoped, tag = 'input window, operand 0, single buffered']
    #allocation3 [shape = 's32[1]{0}', space=sflag, size = 0x4, scoped, tag = 'scoped memory for _lambda_.1']
    %7 = vsyncpa [#allocation3], 0
    // Predicated region
    $region2: #{_lambda_.1} parent=1 // pred_check
      _
    $region3: #{_lambda_.1} parent=1 // pred_check_branch
      %9 = sbr.rel (0) target = $region5
    $region4: #{_lambda_.1} parent=1 // pred_region
      %11 = vsyncadd [#allocation3], 0
      %s13 = sshll.u32 %s0, 4
      %s14 = int_to_ptr.vmem [resolvable:$true] %s13
      %16 = dma.vmem_to_smem %s14, 16, [#allocation2], [#allocation3]
    $region5: #{_lambda_.1} parent=1 // pred_fallthru
      _
    // Predicated region
    $region6: #{_lambda_.1} parent=1 // pred_check
      _
    $region7: #{_lambda_.1} parent=1 // pred_check_branch
      %18 = sbr.rel (0) target = $region9
    $region8: #{_lambda_.1} parent=1 // pred_region
      _
    $region9: #{_lambda_.1} parent=1 // pred_fallthru
      _
    // Predicated region
    $region10: #{_lambda_.1} parent=1 // pred_check
      _
    $region11: #{_lambda_.1} parent=1 // pred_check_branch
      %20 = sbr.rel (0) target = $region13
    $region12: #{_lambda_.1} parent=1 // pred_region
      %22 = dma.done [#allocation3], 16
    $region13: #{_lambda_.1} parent=1 // pred_fallthru
      _
    %23 = sfence
    %s24 = sld [smem:[#allocation2]]
    %s25 = sld [smem:[#allocation2 + $0x1]]
    %s26 = sld [smem:[#allocation2 + $0x2]]
    %s27 = sld [smem:[#allocation2 + $0x3]]
    %s28 = sld [smem:[#allocation2 + $0x4]]
    %s29 = sld [smem:[#allocation2 + $0x5]]
    %s30 = sld [smem:[#allocation2 + $0x6]]
    %s31 = sld [smem:[#allocation2 + $0x7]]
    %s32 = sld [smem:[#allocation2 + $0x8]]
    %s33 = sld [smem:[#allocation2 + $0x9]]
    %s34 = sld [smem:[#allocation2 + $0xa]]
    %s35 = sld [smem:[#allocation2 + $0xb]]
    %s36 = sld [smem:[#allocation2 + $0xc]]
    %s37 = sld [smem:[#allocation2 + $0xd]]
    %s38 = sld [smem:[#allocation2 + $0xe]]
    %s39 = sld [smem:[#allocation2 + $0xf]]
    %s40 = sld [smem:[#allocation2 + $0x10]]
    %s41 = sld [smem:[#allocation2 + $0x11]]
    %s42 = sld [smem:[#allocation2 + $0x12]]
    %s43 = sld [smem:[#allocation2 + $0x13]]
    %s44 = sld [smem:[#allocation2 + $0x14]]
    %s45 = sld [smem:[#allocation2 + $0x15]]
    %s46 = sld [smem:[#allocation2 + $0x16]]
    %s47 = sld [smem:[#allocation2 + $0x17]]
    %s48 = sld [smem:[#allocation2 + $0x18]]
    %s49 = sld [smem:[#allocation2 + $0x19]]
    %s50 = sld [smem:[#allocation2 + $0x1a]]
    %s51 = sld [smem:[#allocation2 + $0x1b]]
    %s52 = sld [smem:[#allocation2 + $0x1c]]
    %s53 = sld [smem:[#allocation2 + $0x1d]]
    %s54 = sld [smem:[#allocation2 + $0x1e]]
    %s55 = sld [smem:[#allocation2 + $0x1f]]
    %s56 = sld [smem:[#allocation2 + $0x20]]
    %s57 = sld [smem:[#allocation2 + $0x21]]
    %s58 = sld [smem:[#allocation2 + $0x22]]
    %s59 = sld [smem:[#allocation2 + $0x23]]
    %s60 = sld [smem:[#allocation2 + $0x24]]
    %s61 = sld [smem:[#allocation2 + $0x25]]
    %s62 = sld [smem:[#allocation2 + $0x26]]
    %s63 = sld [smem:[#allocation2 + $0x27]]
    %s64 = sld [smem:[#allocation2 + $0x28]]
    %s65 = sld [smem:[#allocation2 + $0x29]]
    %s66 = sld [smem:[#allocation2 + $0x2a]]
    %s67 = sld [smem:[#allocation2 + $0x2b]]
    %s68 = sld [smem:[#allocation2 + $0x2c]]
    %s69 = sld [smem:[#allocation2 + $0x2d]]
    %s70 = sld [smem:[#allocation2 + $0x2e]]
    %s71 = sld [smem:[#allocation2 + $0x2f]]
    %s72 = sld [smem:[#allocation2 + $0x30]]
    %s73 = sld [smem:[#allocation2 + $0x31]]
    %s74 = sld [smem:[#allocation2 + $0x32]]
    %s75 = sld [smem:[#allocation2 + $0x33]]
    %s76 = sld [smem:[#allocation2 + $0x34]]
    %s77 = sld [smem:[#allocation2 + $0x35]]
    %s78 = sld [smem:[#allocation2 + $0x36]]
    %s79 = sld [smem:[#allocation2 + $0x37]]
    %s80 = sld [smem:[#allocation2 + $0x38]]
    %s81 = sld [smem:[#allocation2 + $0x39]]
    %s82 = sld [smem:[#allocation2 + $0x3a]]
    %s83 = sld [smem:[#allocation2 + $0x3b]]
    %s84 = sld [smem:[#allocation2 + $0x3c]]
    %s85 = sld [smem:[#allocation2 + $0x3d]]
    %s86 = sld [smem:[#allocation2 + $0x3e]]
    %s87 = sld [smem:[#allocation2 + $0x3f]]
    %s88 = sld [smem:[#allocation2 + $0x40]]
    %s89 = sld [smem:[#allocation2 + $0x41]]
    %s90 = sld [smem:[#allocation2 + $0x42]]
    %s91 = sld [smem:[#allocation2 + $0x43]]
    %s92 = sld [smem:[#allocation2 + $0x44]]
    %s93 = sld [smem:[#allocation2 + $0x45]]
    %s94 = sld [smem:[#allocation2 + $0x46]]
    %s95 = sld [smem:[#allocation2 + $0x47]]
    %s96 = sld [smem:[#allocation2 + $0x48]]
    %s97 = sld [smem:[#allocation2 + $0x49]]
    %s98 = sld [smem:[#allocation2 + $0x4a]]
    %s99 = sld [smem:[#allocation2 + $0x4b]]
    %s100 = sld [smem:[#allocation2 + $0x4c]]
    %s101 = sld [smem:[#allocation2 + $0x4d]]
    %s102 = sld [smem:[#allocation2 + $0x4e]]
    %s103 = sld [smem:[#allocation2 + $0x4f]]
    %s104 = sld [smem:[#allocation2 + $0x50]]
    %v105 = vld [vmem:[%s1] sm:$0xff]
    %v106 = vld [vmem:[%s1 + $0x8] sm:$0xff]
    %s107 = sadd.s32 0, 16
    %s108 = scalar_lea.vmem %s1, %s107
    %v109 = vld [vmem:[%s108] sm:$0xff]
    %v110 = vld [vmem:[%s108 + $0x8] sm:$0xff]
    %s111 = sadd.s32 0, 32
    %s112 = scalar_lea.vmem %s1, %s111
    %v113 = vld [vmem:[%s112] sm:$0xff]
    %v114 = vld [vmem:[%s112 + $0x8] sm:$0xff]
    %s115 = sadd.s32 0, 48
    %s116 = scalar_lea.vmem %s1, %s115
    %v117 = vld [vmem:[%s116] sm:$0xff]
    %v118 = vld [vmem:[%s116 + $0x8] sm:$0xff]
    %v119 = vstv %s96
    %v120 = vstv %s97
    %v121 = vstv %s98
    %v122 = vstv %s99
    %v123 = vstv %s24
    %v124 = vmul.f32 %v105, %v123
    %v125 = vmul.f32 %v106, %v123
    %v126 = vstv %s32
    %v127 = vmul.f32 %v109, %v126
    %v128 = vmul.f32 %v110, %v126
    %v129 = vadd.f32 %v124, %v127
    %v130 = vadd.f32 %v125, %v128
    %v131 = vstv %s40
    %v132 = vmul.f32 %v113, %v131
    %v133 = vmul.f32 %v114, %v131
    %v134 = vadd.f32 %v129, %v132
    %v135 = vadd.f32 %v130, %v133
    %v136 = vstv %s48
    %v137 = vmul.f32 %v117, %v136
    %v138 = vmul.f32 %v118, %v136
    %v139 = vadd.f32 %v134, %v137
    %v140 = vadd.f32 %v135, %v138
    %v141 = vstv %s56
    %v142 = vadd.f32 %v139, %v141
    %v143 = vadd.f32 %v140, %v141
    %v144 = vmax.f32 %v142, 0.0
    %v145 = vmax.f32 %v143, 0.0
    %v146 = vstv %s64
    %v147 = vmul.f32 %v144, %v146
    %v148 = vmul.f32 %v145, %v146
    %v149 = vadd.f32 %v119, %v147
    %v150 = vadd.f32 %v119, %v148
    %v151 = vstv %s65
    %v152 = vmul.f32 %v144, %v151
    %v153 = vmul.f32 %v145, %v151
    %v154 = vadd.f32 %v120, %v152
    %v155 = vadd.f32 %v120, %v153
    %v156 = vstv %s66
    %v157 = vmul.f32 %v144, %v156
    %v158 = vmul.f32 %v145, %v156
    %v159 = vadd.f32 %v121, %v157
    %v160 = vadd.f32 %v121, %v158
    %v161 = vstv %s67
    %v162 = vmul.f32 %v144, %v161
    %v163 = vmul.f32 %v145, %v161
    %v164 = vadd.f32 %v122, %v162
    %v165 = vadd.f32 %v122, %v163
    %v166 = vstv %s25
    %v167 = vmul.f32 %v105, %v166
    %v168 = vmul.f32 %v106, %v166
    %v169 = vstv %s33
    %v170 = vmul.f32 %v109, %v169
    %v171 = vmul.f32 %v110, %v169
    %v172 = vadd.f32 %v167, %v170
    %v173 = vadd.f32 %v168, %v171
    %v174 = vstv %s41
    %v175 = vmul.f32 %v113, %v174
    %v176 = vmul.f32 %v114, %v174
    %v177 = vadd.f32 %v172, %v175
    %v178 = vadd.f32 %v173, %v176
    %v179 = vstv %s49
    %v180 = vmul.f32 %v117, %v179
    %v181 = vmul.f32 %v118, %v179
    %v182 = vadd.f32 %v177, %v180
    %v183 = vadd.f32 %v178, %v181
    %v184 = vstv %s57
    %v185 = vadd.f32 %v182, %v184
    %v186 = vadd.f32 %v183, %v184
    %v187 = vmax.f32 %v185, 0.0
    %v188 = vmax.f32 %v186, 0.0
    %v189 = vstv %s68
    %v190 = vmul.f32 %v187, %v189
    %v191 = vmul.f32 %v188, %v189
    %v192 = vadd.f32 %v149, %v190
    %v193 = vadd.f32 %v150, %v191
    %v194 = vstv %s69
    %v195 = vmul.f32 %v187, %v194
    %v196 = vmul.f32 %v188, %v194
    %v197 = vadd.f32 %v154, %v195
    %v198 = vadd.f32 %v155, %v196
    %v199 = vstv %s70
    %v200 = vmul.f32 %v187, %v199
    %v201 = vmul.f32 %v188, %v199
    %v202 = vadd.f32 %v159, %v200
    %v203 = vadd.f32 %v160, %v201
    %v204 = vstv %s71
    %v205 = vmul.f32 %v187, %v204
    %v206 = vmul.f32 %v188, %v204
    %v207 = vadd.f32 %v164, %v205
    %v208 = vadd.f32 %v165, %v206
    %v209 = vstv %s26
    %v210 = vmul.f32 %v105, %v209
    %v211 = vmul.f32 %v106, %v209
    %v212 = vstv %s34
    %v213 = vmul.f32 %v109, %v212
    %v214 = vmul.f32 %v110, %v212
    %v215 = vadd.f32 %v210, %v213
    %v216 = vadd.f32 %v211, %v214
    %v217 = vstv %s42
    %v218 = vmul.f32 %v113, %v217
    %v219 = vmul.f32 %v114, %v217
    %v220 = vadd.f32 %v215, %v218
    %v221 = vadd.f32 %v216, %v219
    %v222 = vstv %s50
    %v223 = vmul.f32 %v117, %v222
    %v224 = vmul.f32 %v118, %v222
    %v225 = vadd.f32 %v220, %v223
    %v226 = vadd.f32 %v221, %v224
    %v227 = vstv %s58
    %v228 = vadd.f32 %v225, %v227
    %v229 = vadd.f32 %v226, %v227
    %v230 = vmax.f32 %v228, 0.0
    %v231 = vmax.f32 %v229, 0.0
    %v232 = vstv %s72
    %v233 = vmul.f32 %v230, %v232
    %v234 = vmul.f32 %v231, %v232
    %v235 = vadd.f32 %v192, %v233
    %v236 = vadd.f32 %v193, %v234
    %v237 = vstv %s73
    %v238 = vmul.f32 %v230, %v237
    %v239 = vmul.f32 %v231, %v237
    %v240 = vadd.f32 %v197, %v238
    %v241 = vadd.f32 %v198, %v239
    %v242 = vstv %s74
    %v243 = vmul.f32 %v230, %v242
    %v244 = vmul.f32 %v231, %v242
    %v245 = vadd.f32 %v202, %v243
    %v246 = vadd.f32 %v203, %v244
    %v247 = vstv %s75
    %v248 = vmul.f32 %v230, %v247
    %v249 = vmul.f32 %v231, %v247
    %v250 = vadd.f32 %v207, %v248
    %v251 = vadd.f32 %v208, %v249
    %v252 = vstv %s27
    %v253 = vmul.f32 %v105, %v252
    %v254 = vmul.f32 %v106, %v252
    %v255 = vstv %s35
    %v256 = vmul.f32 %v109, %v255
    %v257 = vmul.f32 %v110, %v255
    %v258 = vadd.f32 %v253, %v256
    %v259 = vadd.f32 %v254, %v257
    %v260 = vstv %s43
    %v261 = vmul.f32 %v113, %v260
    %v262 = vmul.f32 %v114, %v260
    %v263 = vadd.f32 %v258, %v261
    %v264 = vadd.f32 %v259, %v262
    %v265 = vstv %s51
    %v266 = vmul.f32 %v117, %v265
    %v267 = vmul.f32 %v118, %v265
    %v268 = vadd.f32 %v263, %v266
    %v269 = vadd.f32 %v264, %v267
    %v270 = vstv %s59
    %v271 = vadd.f32 %v268, %v270
    %v272 = vadd.f32 %v269, %v270
    %v273 = vmax.f32 %v271, 0.0
    %v274 = vmax.f32 %v272, 0.0
    %v275 = vstv %s76
    %v276 = vmul.f32 %v273, %v275
    %v277 = vmul.f32 %v274, %v275
    %v278 = vadd.f32 %v235, %v276
    %v279 = vadd.f32 %v236, %v277
    %v280 = vstv %s77
    %v281 = vmul.f32 %v273, %v280
    %v282 = vmul.f32 %v274, %v280
    %v283 = vadd.f32 %v240, %v281
    %v284 = vadd.f32 %v241, %v282
    %v285 = vstv %s78
    %v286 = vmul.f32 %v273, %v285
    %v287 = vmul.f32 %v274, %v285
    %v288 = vadd.f32 %v245, %v286
    %v289 = vadd.f32 %v246, %v287
    %v290 = vstv %s79
    %v291 = vmul.f32 %v273, %v290
    %v292 = vmul.f32 %v274, %v290
    %v293 = vadd.f32 %v250, %v291
    %v294 = vadd.f32 %v251, %v292
    %v295 = vstv %s28
    %v296 = vmul.f32 %v105, %v295
    %v297 = vmul.f32 %v106, %v295
    %v298 = vstv %s36
    %v299 = vmul.f32 %v109, %v298
    %v300 = vmul.f32 %v110, %v298
    %v301 = vadd.f32 %v296, %v299
    %v302 = vadd.f32 %v297, %v300
    %v303 = vstv %s44
    %v304 = vmul.f32 %v113, %v303
    %v305 = vmul.f32 %v114, %v303
    %v306 = vadd.f32 %v301, %v304
    %v307 = vadd.f32 %v302, %v305
    %v308 = vstv %s52
    %v309 = vmul.f32 %v117, %v308
    %v310 = vmul.f32 %v118, %v308
    %v311 = vadd.f32 %v306, %v309
    %v312 = vadd.f32 %v307, %v310
    %v313 = vstv %s60
    %v314 = vadd.f32 %v311, %v313
    %v315 = vadd.f32 %v312, %v313
    %v316 = vmax.f32 %v314, 0.0
    %v317 = vmax.f32 %v315, 0.0
    %v318 = vstv %s80
    %v319 = vmul.f32 %v316, %v318
    %v320 = vmul.f32 %v317, %v318
    %v321 = vadd.f32 %v278, %v319
    %v322 = vadd.f32 %v279, %v320
    %v323 = vstv %s81
    %v324 = vmul.f32 %v316, %v323
    %v325 = vmul.f32 %v317, %v323
    %v326 = vadd.f32 %v283, %v324
    %v327 = vadd.f32 %v284, %v325
    %v328 = vstv %s82
    %v329 = vmul.f32 %v316, %v328
    %v330 = vmul.f32 %v317, %v328
    %v331 = vadd.f32 %v288, %v329
    %v332 = vadd.f32 %v289, %v330
    %v333 = vstv %s83
    %v334 = vmul.f32 %v316, %v333
    %v335 = vmul.f32 %v317, %v333
    %v336 = vadd.f32 %v293, %v334
    %v337 = vadd.f32 %v294, %v335
    %v338 = vstv %s29
    %v339 = vmul.f32 %v105, %v338
    %v340 = vmul.f32 %v106, %v338
    %v341 = vstv %s37
    %v342 = vmul.f32 %v109, %v341
    %v343 = vmul.f32 %v110, %v341
    %v344 = vadd.f32 %v339, %v342
    %v345 = vadd.f32 %v340, %v343
    %v346 = vstv %s45
    %v347 = vmul.f32 %v113, %v346
    %v348 = vmul.f32 %v114, %v346
    %v349 = vadd.f32 %v344, %v347
    %v350 = vadd.f32 %v345, %v348
    %v351 = vstv %s53
    %v352 = vmul.f32 %v117, %v351
    %v353 = vmul.f32 %v118, %v351
    %v354 = vadd.f32 %v349, %v352
    %v355 = vadd.f32 %v350, %v353
    %v356 = vstv %s61
    %v357 = vadd.f32 %v354, %v356
    %v358 = vadd.f32 %v355, %v356
    %v359 = vmax.f32 %v357, 0.0
    %v360 = vmax.f32 %v358, 0.0
    %v361 = vstv %s84
    %v362 = vmul.f32 %v359, %v361
    %v363 = vmul.f32 %v360, %v361
    %v364 = vadd.f32 %v321, %v362
    %v365 = vadd.f32 %v322, %v363
    %v366 = vstv %s85
    %v367 = vmul.f32 %v359, %v366
    %v368 = vmul.f32 %v360, %v366
    %v369 = vadd.f32 %v326, %v367
    %v370 = vadd.f32 %v327, %v368
    %v371 = vstv %s86
    %v372 = vmul.f32 %v359, %v371
    %v373 = vmul.f32 %v360, %v371
    %v374 = vadd.f32 %v331, %v372
    %v375 = vadd.f32 %v332, %v373
    %v376 = vstv %s87
    %v377 = vmul.f32 %v359, %v376
    %v378 = vmul.f32 %v360, %v376
    %v379 = vadd.f32 %v336, %v377
    %v380 = vadd.f32 %v337, %v378
    %v381 = vstv %s30
    %v382 = vmul.f32 %v105, %v381
    %v383 = vmul.f32 %v106, %v381
    %v384 = vstv %s38
    %v385 = vmul.f32 %v109, %v384
    %v386 = vmul.f32 %v110, %v384
    %v387 = vadd.f32 %v382, %v385
    %v388 = vadd.f32 %v383, %v386
    %v389 = vstv %s46
    %v390 = vmul.f32 %v113, %v389
    %v391 = vmul.f32 %v114, %v389
    %v392 = vadd.f32 %v387, %v390
    %v393 = vadd.f32 %v388, %v391
    %v394 = vstv %s54
    %v395 = vmul.f32 %v117, %v394
    %v396 = vmul.f32 %v118, %v394
    %v397 = vadd.f32 %v392, %v395
    %v398 = vadd.f32 %v393, %v396
    %v399 = vstv %s62
    %v400 = vadd.f32 %v397, %v399
    %v401 = vadd.f32 %v398, %v399
    %v402 = vmax.f32 %v400, 0.0
    %v403 = vmax.f32 %v401, 0.0
    %v404 = vstv %s88
    %v405 = vmul.f32 %v402, %v404
    %v406 = vmul.f32 %v403, %v404
    %v407 = vadd.f32 %v364, %v405
    %v408 = vadd.f32 %v365, %v406
    %v409 = vstv %s89
    %v410 = vmul.f32 %v402, %v409
    %v411 = vmul.f32 %v403, %v409
    %v412 = vadd.f32 %v369, %v410
    %v413 = vadd.f32 %v370, %v411
    %v414 = vstv %s90
    %v415 = vmul.f32 %v402, %v414
    %v416 = vmul.f32 %v403, %v414
    %v417 = vadd.f32 %v374, %v415
    %v418 = vadd.f32 %v375, %v416
    %v419 = vstv %s91
    %v420 = vmul.f32 %v402, %v419
    %v421 = vmul.f32 %v403, %v419
    %v422 = vadd.f32 %v379, %v420
    %v423 = vadd.f32 %v380, %v421
    %v424 = vstv %s31
    %v425 = vmul.f32 %v105, %v424
    %v426 = vmul.f32 %v106, %v424
    %v427 = vstv %s39
    %v428 = vmul.f32 %v109, %v427
    %v429 = vmul.f32 %v110, %v427
    %v430 = vadd.f32 %v425, %v428
    %v431 = vadd.f32 %v426, %v429
    %v432 = vstv %s47
    %v433 = vmul.f32 %v113, %v432
    %v434 = vmul.f32 %v114, %v432
    %v435 = vadd.f32 %v430, %v433
    %v436 = vadd.f32 %v431, %v434
    %v437 = vstv %s55
    %v438 = vmul.f32 %v117, %v437
    %v439 = vmul.f32 %v118, %v437
    %v440 = vadd.f32 %v435, %v438
    %v441 = vadd.f32 %v436, %v439
    %v442 = vstv %s63
    %v443 = vadd.f32 %v440, %v442
    %v444 = vadd.f32 %v441, %v442
    %v445 = vmax.f32 %v443, 0.0
    %v446 = vmax.f32 %v444, 0.0
    %v447 = vstv %s92
    %v448 = vmul.f32 %v445, %v447
    %v449 = vmul.f32 %v446, %v447
    %v450 = vadd.f32 %v407, %v448
    %v451 = vadd.f32 %v408, %v449
    %v452 = vstv %s93
    %v453 = vmul.f32 %v445, %v452
    %v454 = vmul.f32 %v446, %v452
    %v455 = vadd.f32 %v412, %v453
    %v456 = vadd.f32 %v413, %v454
    %v457 = vstv %s94
    %v458 = vmul.f32 %v445, %v457
    %v459 = vmul.f32 %v446, %v457
    %v460 = vadd.f32 %v417, %v458
    %v461 = vadd.f32 %v418, %v459
    %v462 = vstv %s95
    %v463 = vmul.f32 %v445, %v462
    %v464 = vmul.f32 %v446, %v462
    %v465 = vadd.f32 %v422, %v463
    %v466 = vadd.f32 %v423, %v464
    %v467 = vstv %s104
    %v468 = vmax.f32 %v450, 0.0
    %v469 = vmax.f32 %v451, 0.0
    %v470 = vstv %s100
    %v471 = vmul.f32 %v468, %v470
    %v472 = vmul.f32 %v469, %v470
    %v473 = vadd.f32 %v467, %v471
    %v474 = vadd.f32 %v467, %v472
    %v475 = vmax.f32 %v455, 0.0
    %v476 = vmax.f32 %v456, 0.0
    %v477 = vstv %s101
    %v478 = vmul.f32 %v475, %v477
    %v479 = vmul.f32 %v476, %v477
    %v480 = vadd.f32 %v473, %v478
    %v481 = vadd.f32 %v474, %v479
    %v482 = vmax.f32 %v460, 0.0
    %v483 = vmax.f32 %v461, 0.0
    %v484 = vstv %s102
    %v485 = vmul.f32 %v482, %v484
    %v486 = vmul.f32 %v483, %v484
    %v487 = vadd.f32 %v480, %v485
    %v488 = vadd.f32 %v481, %v486
    %v489 = vmax.f32 %v465, 0.0
    %v490 = vmax.f32 %v466, 0.0
    %v491 = vstv %s103
    %v492 = vmul.f32 %v489, %v491
    %v493 = vmul.f32 %v490, %v491
    %v494 = vadd.f32 %v487, %v492
    %v495 = vadd.f32 %v488, %v493
    %496 = vst [vmem:[%s2] sm:$0xff] %v494
    %497 = vst [vmem:[%s2 + $0x8] sm:$0xff] %v495
    // Predicated region
    $region14: #{_lambda_.1} parent=1 // pred_check
      _
    $region15: #{_lambda_.1} parent=1 // pred_check_branch
      %499 = sbr.rel (0) target = $region17
    $region16: #{_lambda_.1} parent=1 // pred_region
      _
    $region17: #{_lambda_.1} parent=1 // pred_fallthru
      _
    // Predicated region
    $region18: #{_lambda_.1} parent=1 // pred_check
      _
    $region19: #{_lambda_.1} parent=1 // pred_check_branch
      %501 = sbr.rel (0) target = $region21
    $region20: #{_lambda_.1} parent=1 // pred_region
      _
    $region21: #{_lambda_.1} parent=1 // pred_fallthru
      _
    %502 = vsyncpa [#allocation3], 1

// kernel: _lambda_.1
$region0: #{_lambda_.1}
  #allocation0 [shape = 'u32[]', space=smem, size = 0x4, offset = 0x4, fixed_abs, tag = 'smem constant byte address 0x4 - core index']
  #allocation1 [shape = 'u32[72,128]{1,0:T(1,128)}', space=vmem, size = 0x9000, scoped, tag = 'internal scratch']
  %s0 = inlined_call_operand.vmem [shape: f32[81], index: 0, kind: input, shape index: {}]
  %s1 = inlined_call_operand.vmem [shape: f32[4,16,128], index: 1, kind: input, shape index: {}]
  %s2 = inlined_call_operand.vmem [shape: f32[16,128], index: 2, kind: output, shape index: {}]
  %s3 = sld [smem:[#allocation0]]
  $region22: #{_lambda_.1} parent=0
    _
  %s5 = ssub.s32 1, %s3
  %s6 = scalar_select 0, %s5, %s3
  $region1: #{_lambda_.1} parent=0
    #allocation2 [shape = 'u8[512]{0}', space=smem, size = 0x200, scoped, tag = 'input window, operand 0, single buffered']
    #allocation3 [shape = 's32[1]{0}', space=sflag, size = 0x4, scoped, tag = 'scoped memory for _lambda_.1']
    %7 = vsyncpa [#allocation3], 0
    // Predicated region
    $region2: #{_lambda_.1} parent=1 // pred_check
      _
    $region3: #{_lambda_.1} parent=1 // pred_check_branch
      %9 = sbr.rel (0) target = $region5
    $region4: #{_lambda_.1} parent=1 // pred_region
      %11 = vsyncadd [#allocation3], 0
      %s13 = sshll.u32 %s0, 4
      %s14 = int_to_ptr.vmem [resolvable:$true] %s13
      %16 = dma.vmem_to_smem %s14, 16, [#allocation2], [#allocation3]
    $region5: #{_lambda_.1} parent=1 // pred_fallthru
      _
    // Predicated region
    $region6: #{_lambda_.1} parent=1 // pred_check
      _
    $region7: #{_lambda_.1} parent=1 // pred_check_branch
      %18 = sbr.rel (0) target = $region9
    $region8: #{_lambda_.1} parent=1 // pred_region
      _
    $region9: #{_lambda_.1} parent=1 // pred_fallthru
      _
    // Predicated region
    $region10: #{_lambda_.1} parent=1 // pred_check
      _
    $region11: #{_lambda_.1} parent=1 // pred_check_branch
      %20 = sbr.rel (0) target = $region13
    $region12: #{_lambda_.1} parent=1 // pred_region
      %22 = dma.done [#allocation3], 16
    $region13: #{_lambda_.1} parent=1 // pred_fallthru
      _
    %23 = sfence
    %s24 = sld [smem:[#allocation2]]
    %s25 = sld [smem:[#allocation2 + $0x1]]
    %s26 = sld [smem:[#allocation2 + $0x2]]
    %s27 = sld [smem:[#allocation2 + $0x3]]
    %s28 = sld [smem:[#allocation2 + $0x4]]
    %s29 = sld [smem:[#allocation2 + $0x5]]
    %s30 = sld [smem:[#allocation2 + $0x6]]
    %s31 = sld [smem:[#allocation2 + $0x7]]
    %s32 = sld [smem:[#allocation2 + $0x8]]
    %s33 = sld [smem:[#allocation2 + $0x9]]
    %s34 = sld [smem:[#allocation2 + $0xa]]
    %s35 = sld [smem:[#allocation2 + $0xb]]
    %s36 = sld [smem:[#allocation2 + $0xc]]
    %s37 = sld [smem:[#allocation2 + $0xd]]
    %s38 = sld [smem:[#allocation2 + $0xe]]
    %s39 = sld [smem:[#allocation2 + $0xf]]
    %s40 = sld [smem:[#allocation2 + $0x10]]
    %s41 = sld [smem:[#allocation2 + $0x11]]
    %s42 = sld [smem:[#allocation2 + $0x12]]
    %s43 = sld [smem:[#allocation2 + $0x13]]
    %s44 = sld [smem:[#allocation2 + $0x14]]
    %s45 = sld [smem:[#allocation2 + $0x15]]
    %s46 = sld [smem:[#allocation2 + $0x16]]
    %s47 = sld [smem:[#allocation2 + $0x17]]
    %s48 = sld [smem:[#allocation2 + $0x18]]
    %s49 = sld [smem:[#allocation2 + $0x19]]
    %s50 = sld [smem:[#allocation2 + $0x1a]]
    %s51 = sld [smem:[#allocation2 + $0x1b]]
    %s52 = sld [smem:[#allocation2 + $0x1c]]
    %s53 = sld [smem:[#allocation2 + $0x1d]]
    %s54 = sld [smem:[#allocation2 + $0x1e]]
    %s55 = sld [smem:[#allocation2 + $0x1f]]
    %s56 = sld [smem:[#allocation2 + $0x20]]
    %s57 = sld [smem:[#allocation2 + $0x21]]
    %s58 = sld [smem:[#allocation2 + $0x22]]
    %s59 = sld [smem:[#allocation2 + $0x23]]
    %s60 = sld [smem:[#allocation2 + $0x24]]
    %s61 = sld [smem:[#allocation2 + $0x25]]
    %s62 = sld [smem:[#allocation2 + $0x26]]
    %s63 = sld [smem:[#allocation2 + $0x27]]
    %s64 = sld [smem:[#allocation2 + $0x28]]
    %s65 = sld [smem:[#allocation2 + $0x29]]
    %s66 = sld [smem:[#allocation2 + $0x2a]]
    %s67 = sld [smem:[#allocation2 + $0x2b]]
    %s68 = sld [smem:[#allocation2 + $0x2c]]
    %s69 = sld [smem:[#allocation2 + $0x2d]]
    %s70 = sld [smem:[#allocation2 + $0x2e]]
    %s71 = sld [smem:[#allocation2 + $0x2f]]
    %s72 = sld [smem:[#allocation2 + $0x30]]
    %s73 = sld [smem:[#allocation2 + $0x31]]
    %s74 = sld [smem:[#allocation2 + $0x32]]
    %s75 = sld [smem:[#allocation2 + $0x33]]
    %s76 = sld [smem:[#allocation2 + $0x34]]
    %s77 = sld [smem:[#allocation2 + $0x35]]
    %s78 = sld [smem:[#allocation2 + $0x36]]
    %s79 = sld [smem:[#allocation2 + $0x37]]
    %s80 = sld [smem:[#allocation2 + $0x38]]
    %s81 = sld [smem:[#allocation2 + $0x39]]
    %s82 = sld [smem:[#allocation2 + $0x3a]]
    %s83 = sld [smem:[#allocation2 + $0x3b]]
    %s84 = sld [smem:[#allocation2 + $0x3c]]
    %s85 = sld [smem:[#allocation2 + $0x3d]]
    %s86 = sld [smem:[#allocation2 + $0x3e]]
    %s87 = sld [smem:[#allocation2 + $0x3f]]
    %s88 = sld [smem:[#allocation2 + $0x40]]
    %s89 = sld [smem:[#allocation2 + $0x41]]
    %s90 = sld [smem:[#allocation2 + $0x42]]
    %s91 = sld [smem:[#allocation2 + $0x43]]
    %s92 = sld [smem:[#allocation2 + $0x44]]
    %s93 = sld [smem:[#allocation2 + $0x45]]
    %s94 = sld [smem:[#allocation2 + $0x46]]
    %s95 = sld [smem:[#allocation2 + $0x47]]
    %s96 = sld [smem:[#allocation2 + $0x48]]
    %s97 = sld [smem:[#allocation2 + $0x49]]
    %s98 = sld [smem:[#allocation2 + $0x4a]]
    %s99 = sld [smem:[#allocation2 + $0x4b]]
    %s100 = sld [smem:[#allocation2 + $0x4c]]
    %s101 = sld [smem:[#allocation2 + $0x4d]]
    %s102 = sld [smem:[#allocation2 + $0x4e]]
    %s103 = sld [smem:[#allocation2 + $0x4f]]
    %s104 = sld [smem:[#allocation2 + $0x50]]
    %v105 = vld [vmem:[%s1] sm:$0xff]
    %v106 = vld [vmem:[%s1 + $0x8] sm:$0xff]
    %s107 = sadd.s32 0, 16
    %s108 = scalar_lea.vmem %s1, %s107
    %v109 = vld [vmem:[%s108] sm:$0xff]
    %v110 = vld [vmem:[%s108 + $0x8] sm:$0xff]
    %s111 = sadd.s32 0, 32
    %s112 = scalar_lea.vmem %s1, %s111
    %v113 = vld [vmem:[%s112] sm:$0xff]
    %v114 = vld [vmem:[%s112 + $0x8] sm:$0xff]
    %s115 = sadd.s32 0, 48
    %s116 = scalar_lea.vmem %s1, %s115
    %v117 = vld [vmem:[%s116] sm:$0xff]
    %v118 = vld [vmem:[%s116 + $0x8] sm:$0xff]
    %v119 = vstv %s96
    %v120 = vstv %s97
    %v121 = vstv %s98
    %v122 = vstv %s99
    %v123 = vstv %s24
    %v124 = vmul.f32 %v105, %v123
    %v125 = vmul.f32 %v106, %v123
    %v126 = vstv %s32
    %v127 = vmul.f32 %v109, %v126
    %v128 = vmul.f32 %v110, %v126
    %v129 = vadd.f32 %v124, %v127
    %v130 = vadd.f32 %v125, %v128
    %v131 = vstv %s40
    %v132 = vmul.f32 %v113, %v131
    %v133 = vmul.f32 %v114, %v131
    %v134 = vadd.f32 %v129, %v132
    %v135 = vadd.f32 %v130, %v133
    %v136 = vstv %s48
    %v137 = vmul.f32 %v117, %v136
    %v138 = vmul.f32 %v118, %v136
    %v139 = vadd.f32 %v134, %v137
    %v140 = vadd.f32 %v135, %v138
    %v141 = vstv %s56
    %v142 = vadd.f32 %v139, %v141
    %v143 = vadd.f32 %v140, %v141
    %v144 = vmax.f32 %v142, 0.0
    %v145 = vmax.f32 %v143, 0.0
    %v146 = vstv %s64
    %v147 = vmul.f32 %v144, %v146
    %v148 = vmul.f32 %v145, %v146
    %v149 = vadd.f32 %v119, %v147
    %v150 = vadd.f32 %v119, %v148
    %v151 = vstv %s65
    %v152 = vmul.f32 %v144, %v151
    %v153 = vmul.f32 %v145, %v151
    %v154 = vadd.f32 %v120, %v152
    %v155 = vadd.f32 %v120, %v153
    %v156 = vstv %s66
    %v157 = vmul.f32 %v144, %v156
    %v158 = vmul.f32 %v145, %v156
    %v159 = vadd.f32 %v121, %v157
    %v160 = vadd.f32 %v121, %v158
    %v161 = vstv %s67
    %v162 = vmul.f32 %v144, %v161
    %v163 = vmul.f32 %v145, %v161
    %v164 = vadd.f32 %v122, %v162
    %v165 = vadd.f32 %v122, %v163
    %v166 = vstv %s25
    %v167 = vmul.f32 %v105, %v166
    %v168 = vmul.f32 %v106, %v166
    %v169 = vstv %s33
    %v170 = vmul.f32 %v109, %v169
    %v171 = vmul.f32 %v110, %v169
    %v172 = vadd.f32 %v167, %v170
    %v173 = vadd.f32 %v168, %v171
    %v174 = vstv %s41
    %v175 = vmul.f32 %v113, %v174
    %v176 = vmul.f32 %v114, %v174
    %v177 = vadd.f32 %v172, %v175
    %v178 = vadd.f32 %v173, %v176
    %v179 = vstv %s49
    %v180 = vmul.f32 %v117, %v179
    %v181 = vmul.f32 %v118, %v179
    %v182 = vadd.f32 %v177, %v180
    %v183 = vadd.f32 %v178, %v181
    %v184 = vstv %s57
    %v185 = vadd.f32 %v182, %v184
    %v186 = vadd.f32 %v183, %v184
    %v187 = vmax.f32 %v185, 0.0
    %v188 = vmax.f32 %v186, 0.0
    %v189 = vstv %s68
    %v190 = vmul.f32 %v187, %v189
    %v191 = vmul.f32 %v188, %v189
    %v192 = vadd.f32 %v149, %v190
    %v193 = vadd.f32 %v150, %v191
    %v194 = vstv %s69
    %v195 = vmul.f32 %v187, %v194
    %v196 = vmul.f32 %v188, %v194
    %v197 = vadd.f32 %v154, %v195
    %v198 = vadd.f32 %v155, %v196
    %v199 = vstv %s70
    %v200 = vmul.f32 %v187, %v199
    %v201 = vmul.f32 %v188, %v199
    %v202 = vadd.f32 %v159, %v200
    %v203 = vadd.f32 %v160, %v201
    %v204 = vstv %s71
    %v205 = vmul.f32 %v187, %v204
    %v206 = vmul.f32 %v188, %v204
    %v207 = vadd.f32 %v164, %v205
    %v208 = vadd.f32 %v165, %v206
    %v209 = vstv %s26
    %v210 = vmul.f32 %v105, %v209
    %v211 = vmul.f32 %v106, %v209
    %v212 = vstv %s34
    %v213 = vmul.f32 %v109, %v212
    %v214 = vmul.f32 %v110, %v212
    %v215 = vadd.f32 %v210, %v213
    %v216 = vadd.f32 %v211, %v214
    %v217 = vstv %s42
    %v218 = vmul.f32 %v113, %v217
    %v219 = vmul.f32 %v114, %v217
    %v220 = vadd.f32 %v215, %v218
    %v221 = vadd.f32 %v216, %v219
    %v222 = vstv %s50
    %v223 = vmul.f32 %v117, %v222
    %v224 = vmul.f32 %v118, %v222
    %v225 = vadd.f32 %v220, %v223
    %v226 = vadd.f32 %v221, %v224
    %v227 = vstv %s58
    %v228 = vadd.f32 %v225, %v227
    %v229 = vadd.f32 %v226, %v227
    %v230 = vmax.f32 %v228, 0.0
    %v231 = vmax.f32 %v229, 0.0
    %v232 = vstv %s72
    %v233 = vmul.f32 %v230, %v232
    %v234 = vmul.f32 %v231, %v232
    %v235 = vadd.f32 %v192, %v233
    %v236 = vadd.f32 %v193, %v234
    %v237 = vstv %s73
    %v238 = vmul.f32 %v230, %v237
    %v239 = vmul.f32 %v231, %v237
    %v240 = vadd.f32 %v197, %v238
    %v241 = vadd.f32 %v198, %v239
    %v242 = vstv %s74
    %v243 = vmul.f32 %v230, %v242
    %v244 = vmul.f32 %v231, %v242
    %v245 = vadd.f32 %v202, %v243
    %v246 = vadd.f32 %v203, %v244
    %v247 = vstv %s75
    %v248 = vmul.f32 %v230, %v247
    %v249 = vmul.f32 %v231, %v247
    %v250 = vadd.f32 %v207, %v248
    %v251 = vadd.f32 %v208, %v249
    %v252 = vstv %s27
    %v253 = vmul.f32 %v105, %v252
    %v254 = vmul.f32 %v106, %v252
    %v255 = vstv %s35
    %v256 = vmul.f32 %v109, %v255
    %v257 = vmul.f32 %v110, %v255
    %v258 = vadd.f32 %v253, %v256
    %v259 = vadd.f32 %v254, %v257
    %v260 = vstv %s43
    %v261 = vmul.f32 %v113, %v260
    %v262 = vmul.f32 %v114, %v260
    %v263 = vadd.f32 %v258, %v261
    %v264 = vadd.f32 %v259, %v262
    %v265 = vstv %s51
    %v266 = vmul.f32 %v117, %v265
    %v267 = vmul.f32 %v118, %v265
    %v268 = vadd.f32 %v263, %v266
    %v269 = vadd.f32 %v264, %v267
    %v270 = vstv %s59
    %v271 = vadd.f32 %v268, %v270
    %v272 = vadd.f32 %v269, %v270
    %v273 = vmax.f32 %v271, 0.0
    %v274 = vmax.f32 %v272, 0.0
    %v275 = vstv %s76
    %v276 = vmul.f32 %v273, %v275
    %v277 = vmul.f32 %v274, %v275
    %v278 = vadd.f32 %v235, %v276
    %v279 = vadd.f32 %v236, %v277
    %v280 = vstv %s77
    %v281 = vmul.f32 %v273, %v280
    %v282 = vmul.f32 %v274, %v280
    %v283 = vadd.f32 %v240, %v281
    %v284 = vadd.f32 %v241, %v282
    %v285 = vstv %s78
    %v286 = vmul.f32 %v273, %v285
    %v287 = vmul.f32 %v274, %v285
    %v288 = vadd.f32 %v245, %v286
    %v289 = vadd.f32 %v246, %v287
    %v290 = vstv %s79
    %v291 = vmul.f32 %v273, %v290
    %v292 = vmul.f32 %v274, %v290
    %v293 = vadd.f32 %v250, %v291
    %v294 = vadd.f32 %v251, %v292
    %v295 = vstv %s28
    %v296 = vmul.f32 %v105, %v295
    %v297 = vmul.f32 %v106, %v295
    %v298 = vstv %s36
    %v299 = vmul.f32 %v109, %v298
    %v300 = vmul.f32 %v110, %v298
    %v301 = vadd.f32 %v296, %v299
    %v302 = vadd.f32 %v297, %v300
    %v303 = vstv %s44
    %v304 = vmul.f32 %v113, %v303
    %v305 = vmul.f32 %v114, %v303
    %v306 = vadd.f32 %v301, %v304
    %v307 = vadd.f32 %v302, %v305
    %v308 = vstv %s52
    %v309 = vmul.f32 %v117, %v308
    %v310 = vmul.f32 %v118, %v308
    %v311 = vadd.f32 %v306, %v309
    %v312 = vadd.f32 %v307, %v310
    %v313 = vstv %s60
    %v314 = vadd.f32 %v311, %v313
    %v315 = vadd.f32 %v312, %v313
    %v316 = vmax.f32 %v314, 0.0
    %v317 = vmax.f32 %v315, 0.0
    %v318 = vstv %s80
    %v319 = vmul.f32 %v316, %v318
    %v320 = vmul.f32 %v317, %v318
    %v321 = vadd.f32 %v278, %v319
    %v322 = vadd.f32 %v279, %v320
    %v323 = vstv %s81
    %v324 = vmul.f32 %v316, %v323
    %v325 = vmul.f32 %v317, %v323
    %v326 = vadd.f32 %v283, %v324
    %v327 = vadd.f32 %v284, %v325
    %v328 = vstv %s82
    %v329 = vmul.f32 %v316, %v328
    %v330 = vmul.f32 %v317, %v328
    %v331 = vadd.f32 %v288, %v329
    %v332 = vadd.f32 %v289, %v330
    %v333 = vstv %s83
    %v334 = vmul.f32 %v316, %v333
    %v335 = vmul.f32 %v317, %v333
    %v336 = vadd.f32 %v293, %v334
    %v337 = vadd.f32 %v294, %v335
    %v338 = vstv %s29
    %v339 = vmul.f32 %v105, %v338
    %v340 = vmul.f32 %v106, %v338
    %v341 = vstv %s37
    %v342 = vmul.f32 %v109, %v341
    %v343 = vmul.f32 %v110, %v341
    %v344 = vadd.f32 %v339, %v342
    %v345 = vadd.f32 %v340, %v343
    %v346 = vstv %s45
    %v347 = vmul.f32 %v113, %v346
    %v348 = vmul.f32 %v114, %v346
    %v349 = vadd.f32 %v344, %v347
    %v350 = vadd.f32 %v345, %v348
    %v351 = vstv %s53
    %v352 = vmul.f32 %v117, %v351
    %v353 = vmul.f32 %v118, %v351
    %v354 = vadd.f32 %v349, %v352
    %v355 = vadd.f32 %v350, %v353
    %v356 = vstv %s61
    %v357 = vadd.f32 %v354, %v356
    %v358 = vadd.f32 %v355, %v356
    %v359 = vmax.f32 %v357, 0.0
    %v360 = vmax.f32 %v358, 0.0
    %v361 = vstv %s84
    %v362 = vmul.f32 %v359, %v361
    %v363 = vmul.f32 %v360, %v361
    %v364 = vadd.f32 %v321, %v362
    %v365 = vadd.f32 %v322, %v363
    %v366 = vstv %s85
    %v367 = vmul.f32 %v359, %v366
    %v368 = vmul.f32 %v360, %v366
    %v369 = vadd.f32 %v326, %v367
    %v370 = vadd.f32 %v327, %v368
    %v371 = vstv %s86
    %v372 = vmul.f32 %v359, %v371
    %v373 = vmul.f32 %v360, %v371
    %v374 = vadd.f32 %v331, %v372
    %v375 = vadd.f32 %v332, %v373
    %v376 = vstv %s87
    %v377 = vmul.f32 %v359, %v376
    %v378 = vmul.f32 %v360, %v376
    %v379 = vadd.f32 %v336, %v377
    %v380 = vadd.f32 %v337, %v378
    %v381 = vstv %s30
    %v382 = vmul.f32 %v105, %v381
    %v383 = vmul.f32 %v106, %v381
    %v384 = vstv %s38
    %v385 = vmul.f32 %v109, %v384
    %v386 = vmul.f32 %v110, %v384
    %v387 = vadd.f32 %v382, %v385
    %v388 = vadd.f32 %v383, %v386
    %v389 = vstv %s46
    %v390 = vmul.f32 %v113, %v389
    %v391 = vmul.f32 %v114, %v389
    %v392 = vadd.f32 %v387, %v390
    %v393 = vadd.f32 %v388, %v391
    %v394 = vstv %s54
    %v395 = vmul.f32 %v117, %v394
    %v396 = vmul.f32 %v118, %v394
    %v397 = vadd.f32 %v392, %v395
    %v398 = vadd.f32 %v393, %v396
    %v399 = vstv %s62
    %v400 = vadd.f32 %v397, %v399
    %v401 = vadd.f32 %v398, %v399
    %v402 = vmax.f32 %v400, 0.0
    %v403 = vmax.f32 %v401, 0.0
    %v404 = vstv %s88
    %v405 = vmul.f32 %v402, %v404
    %v406 = vmul.f32 %v403, %v404
    %v407 = vadd.f32 %v364, %v405
    %v408 = vadd.f32 %v365, %v406
    %v409 = vstv %s89
    %v410 = vmul.f32 %v402, %v409
    %v411 = vmul.f32 %v403, %v409
    %v412 = vadd.f32 %v369, %v410
    %v413 = vadd.f32 %v370, %v411
    %v414 = vstv %s90
    %v415 = vmul.f32 %v402, %v414
    %v416 = vmul.f32 %v403, %v414
    %v417 = vadd.f32 %v374, %v415
    %v418 = vadd.f32 %v375, %v416
    %v419 = vstv %s91
    %v420 = vmul.f32 %v402, %v419
    %v421 = vmul.f32 %v403, %v419
    %v422 = vadd.f32 %v379, %v420
    %v423 = vadd.f32 %v380, %v421
    %v424 = vstv %s31
    %v425 = vmul.f32 %v105, %v424
    %v426 = vmul.f32 %v106, %v424
    %v427 = vstv %s39
    %v428 = vmul.f32 %v109, %v427
    %v429 = vmul.f32 %v110, %v427
    %v430 = vadd.f32 %v425, %v428
    %v431 = vadd.f32 %v426, %v429
    %v432 = vstv %s47
    %v433 = vmul.f32 %v113, %v432
    %v434 = vmul.f32 %v114, %v432
    %v435 = vadd.f32 %v430, %v433
    %v436 = vadd.f32 %v431, %v434
    %v437 = vstv %s55
    %v438 = vmul.f32 %v117, %v437
    %v439 = vmul.f32 %v118, %v437
    %v440 = vadd.f32 %v435, %v438
    %v441 = vadd.f32 %v436, %v439
    %v442 = vstv %s63
    %v443 = vadd.f32 %v440, %v442
    %v444 = vadd.f32 %v441, %v442
    %v445 = vmax.f32 %v443, 0.0
    %v446 = vmax.f32 %v444, 0.0
    %v447 = vstv %s92
    %v448 = vmul.f32 %v445, %v447
    %v449 = vmul.f32 %v446, %v447
    %v450 = vadd.f32 %v407, %v448
    %v451 = vadd.f32 %v408, %v449
    %v452 = vstv %s93
    %v453 = vmul.f32 %v445, %v452
    %v454 = vmul.f32 %v446, %v452
    %v455 = vadd.f32 %v412, %v453
    %v456 = vadd.f32 %v413, %v454
    %v457 = vstv %s94
    %v458 = vmul.f32 %v445, %v457
    %v459 = vmul.f32 %v446, %v457
    %v460 = vadd.f32 %v417, %v458
    %v461 = vadd.f32 %v418, %v459
    %v462 = vstv %s95
    %v463 = vmul.f32 %v445, %v462
    %v464 = vmul.f32 %v446, %v462
    %v465 = vadd.f32 %v422, %v463
    %v466 = vadd.f32 %v423, %v464
    %v467 = vstv %s104
    %v468 = vmax.f32 %v450, 0.0
    %v469 = vmax.f32 %v451, 0.0
    %v470 = vstv %s100
    %v471 = vmul.f32 %v468, %v470
    %v472 = vmul.f32 %v469, %v470
    %v473 = vadd.f32 %v467, %v471
    %v474 = vadd.f32 %v467, %v472
    %v475 = vmax.f32 %v455, 0.0
    %v476 = vmax.f32 %v456, 0.0
    %v477 = vstv %s101
    %v478 = vmul.f32 %v475, %v477
    %v479 = vmul.f32 %v476, %v477
    %v480 = vadd.f32 %v473, %v478
    %v481 = vadd.f32 %v474, %v479
    %v482 = vmax.f32 %v460, 0.0
    %v483 = vmax.f32 %v461, 0.0
    %v484 = vstv %s102
    %v485 = vmul.f32 %v482, %v484
    %v486 = vmul.f32 %v483, %v484
    %v487 = vadd.f32 %v480, %v485
    %v488 = vadd.f32 %v481, %v486
    %v489 = vmax.f32 %v465, 0.0
    %v490 = vmax.f32 %v466, 0.0
    %v491 = vstv %s103
    %v492 = vmul.f32 %v489, %v491
    %v493 = vmul.f32 %v490, %v491
    %v494 = vadd.f32 %v487, %v492
    %v495 = vadd.f32 %v488, %v493
    %496 = vst [vmem:[%s2] sm:$0xff] %v494
    %497 = vst [vmem:[%s2 + $0x8] sm:$0xff] %v495
    // Predicated region
    $region14: #{_lambda_.1} parent=1 // pred_check
      _
    $region15: #{_lambda_.1} parent=1 // pred_check_branch
      %499 = sbr.rel (0) target = $region17
    $region16: #{_lambda_.1} parent=1 // pred_region
      _
    $region17: #{_lambda_.1} parent=1 // pred_fallthru
      _
    // Predicated region
    $region18: #{_lambda_.1} parent=1 // pred_check
      _
    $region19: #{_lambda_.1} parent=1 // pred_check_branch
      %501 = sbr.rel (0) target = $region21
    $region20: #{_lambda_.1} parent=1 // pred_region
      _
    $region21: #{_lambda_.1} parent=1 // pred_fallthru
      _
    %502 = vsyncpa [#allocation3], 1

</llo_original>
